<compile_context>
chip_gen: v7x
topology: tpu7x:2x2x1
jax: 0.10.0
libtpu: 0.0.40
codegen_flags: <defaults>
</compile_context>

<pallas_src>
import functools

import jax
import jax.numpy as jnp
import numpy as np
from jax import lax
from jax.experimental import pallas as pl
from jax.experimental.pallas import tpu as pltpu


# ---------------------------------------------------------------------------
# Fused CBAM kernel (Bt batch elements per grid step)
# ---------------------------------------------------------------------------
def _cbam_kernel(x_ref, w1_ref, w2_ref, wsp_ref, bsp_ref, o_ref, *, H, W):
    Bt, C, HW = x_ref.shape
    pad = 3 * W + 3

    # ---- grid-step invariants (hoisted out of the per-batch-element loop) ----
    w1 = w1_ref[...]                                   # (Cr, C)   1x1 conv, no bias
    w2 = w2_ref[...]                                   # (C, Cr)   1x1 conv, no bias
    wsp = wsp_ref[...]                                 # (2, 49)   [avg taps; max taps]
    bias = bsp_ref[0]                                  # scalar (SMEM)

    # MXU-friendly averaging vectors (idle MXU instead of XLU lane/sublane reduces)
    avg_hw_vec = jnp.full((HW, 1), 1.0 / HW, jnp.float32)
    avg_c_vec = jnp.full((1, C), 1.0 / C, jnp.float32)

    # Horizontal zero-padding masks for the 7x7 conv (one per dx, hoisted)
    col = lax.broadcasted_iota(jnp.int32, (1, HW), 1) % W
    valid = [jnp.logical_and(col + (dx - 3) >= 0, col + (dx - 3) < W)
             for dx in range(7)]
    zpad = jnp.zeros((2, pad), jnp.float32)

    @pl.loop(0, Bt)
    def _(b):
        x = x_ref[b]                                   # (C, HW) f32, lane-dense

        # ---------------- channel attention ----------------
        avg_c = jnp.dot(x, avg_hw_vec, preferred_element_type=jnp.float32)   # (C, 1)
        max_c = jnp.max(x, axis=1, keepdims=True)                             # (C, 1)
        pooled = jnp.concatenate([avg_c, max_c], axis=1)                      # (C, 2)

        hid = jnp.maximum(jnp.dot(w1, pooled, preferred_element_type=jnp.float32), 0.0)
        mlp = jnp.dot(w2, hid, preferred_element_type=jnp.float32)            # (C, 2)
        scale = jax.nn.sigmoid(mlp[:, 0:1] + mlp[:, 1:2])                     # (C, 1)

        # Reuse the output block as the `out1` buffer (no extra (C, HW) temp).
        o_ref[b] = x * scale
        out1 = o_ref[b]                                # read back only for pooling

        # ---------------- spatial attention ----------------
        avg_hw = jnp.dot(avg_c_vec, out1, preferred_element_type=jnp.float32)  # (1, HW)
        max_hw = jnp.max(out1, axis=0, keepdims=True)                           # (1, HW)
        maps = jnp.concatenate([avg_hw, max_hw], axis=0)                        # (2, HW)
        padded = jnp.concatenate([zpad, maps, zpad], axis=1)                    # (2, HW+2*pad)

        # 7x7 conv, padding=3: one lane slice per tap on the sublane-stacked maps.
        acc0 = jnp.zeros((2, HW), jnp.float32)
        acc1 = jnp.zeros((2, HW), jnp.float32)
        for dx in range(7):
            partial = jnp.zeros((2, HW), jnp.float32)
            for dy in range(7):
                k = dy * 7 + dx                         # tap index
                off = dy * W + dx                       # static lane offset
                wcol = lax.slice(wsp, (0, k), (2, k + 1))          # (2, 1) tap weights
                tap = lax.slice(padded, (0, off), (2, off + HW))   # (2, HW)
                partial = partial + wcol * tap
            masked = jnp.where(valid[dx], partial, 0.0)             # mask once per dx
            if dx % 2 == 0:
                acc0 = acc0 + masked
            else:
                acc1 = acc1 + masked

        conv = jnp.sum(acc0 + acc1, axis=0, keepdims=True)          # (1, HW) sublane add
        satt = jax.nn.sigmoid(conv + bias)

        # Final elementwise multiply, lane-dense store (re-load o_ref, don't keep out1).
        o_ref[b] = o_ref[b] * satt


# ---------------------------------------------------------------------------
# Wrapper
# ---------------------------------------------------------------------------
def _choose_batch_tile(B, per_elem_bytes, target_bytes=2 << 20):
    """Pick Bt (batch elements per block): ~target_bytes blocks, >=2 grid steps if possible."""
    bt = max(1, min(B, target_bytes // max(per_elem_bytes, 1)))
    if bt >= B and B >= 2:
        bt = max(1, B // 2)        # keep the batch grid axis splittable across v7x TCs
    while B % bt:
        bt -= 1
    return bt


def cbam_forward(x, w1, w2, w_sp, b_sp):
    B, C, H, W = x.shape
    HW = H * W
    Cr = w1.shape[0]

    x_flat = x.reshape(B, C, HW)                        # free metadata reshape
    w_sp_flat = w_sp.reshape(2, 49)                     # row 0: avg taps, row 1: max taps (dy*7+dx)

    Bt = _choose_batch_tile(B, C * HW * 4)
    num_blocks = B // Bt
    block_bytes = Bt * C * HW * 4
    # 2x double-buffered input blocks + 2x output blocks + small weights/headroom,
    # capped at 48 MiB so it always fits v7x's 64 MiB physical VMEM.
    vmem_limit = int(min(48 << 20, max(32 << 20, 4 * block_bytes + (2 << 20))))

    kernel = functools.partial(_cbam_kernel, H=H, W=W)

    flops = int(B * (8 * C * HW + 200 * HW))
    transcendentals = int(B * (C + HW))
    bytes_accessed = int(2 * B * C * HW * 4 + (w1.size + w2.size + w_sp.size + 1) * 4)

    out_flat = pl.pallas_call(
        kernel,
        out_shape=jax.ShapeDtypeStruct((B, C, HW), jnp.float32),
        grid=(num_blocks,),
        in_specs=[
            pl.BlockSpec((Bt, C, HW), lambda b: (b, 0, 0)),
            pl.BlockSpec((Cr, C), lambda b: (0, 0)),
            pl.BlockSpec((C, Cr), lambda b: (0, 0)),
            pl.BlockSpec((2, 49), lambda b: (0, 0)),
            pl.BlockSpec(memory_space=pltpu.MemorySpace.SMEM),   # conv bias (1,)
        ],
        out_specs=pl.BlockSpec((Bt, C, HW), lambda b: (b, 0, 0)),
        compiler_params=pltpu.CompilerParams(
            dimension_semantics=("parallel",),
            vmem_limit_bytes=vmem_limit,
        ),
        cost_estimate=pl.CostEstimate(
            flops=flops,
            transcendentals=transcendentals,
            bytes_accessed=bytes_accessed,
        ),
    )(x_flat, w1, w2, w_sp_flat, b_sp)

    return out_flat.reshape(B, C, H, W)                 # free metadata reshape


# ---------------------------------------------------------------------------
# Pure-JAX reference (mirrors the PyTorch module exactly)
# ---------------------------------------------------------------------------
def cbam_reference(x, w1, w2, w_sp, b_sp):
    avg = jnp.mean(x, axis=(2, 3))                       # (B, C)
    mx = jnp.max(x, axis=(2, 3))                         # (B, C)

    def mlp(v):
        h = jnp.maximum(v @ w1.T, 0.0)
        return h @ w2.T

    scale = jax.nn.sigmoid(mlp(avg) + mlp(mx))           # (B, C)
    out1 = x * scale[:, :, None, None]

    amap = jnp.mean(out1, axis=1, keepdims=True)
    mmap = jnp.max(out1, axis=1, keepdims=True)
    cat = jnp.concatenate([amap, mmap], axis=1)          # (B, 2, H, W)
    conv = lax.conv_general_dilated(cat, w_sp[None], (1, 1), ((3, 3), (3, 3)),
                                    dimension_numbers=("NCHW", "OIHW", "NCHW"))
    satt = jax.nn.sigmoid(conv + b_sp[0])
    return out1 * satt


if __name__ == "__main__":
    B, C, H, W = 2, 32, 16, 16     # channel must be >= ratio=16 (C // 16 > 0)
    ratio = 16
    Cr = C // ratio

    key = jax.random.PRNGKey(0)
    k1, k2, k3, k4, k5 = jax.random.split(key, 5)
    x = jax.random.normal(k1, (B, C, H, W), jnp.float32)
    w1 = jax.random.normal(k2, (Cr, C), jnp.float32) * 0.2     # Conv2d(C, C//16, 1, bias=False)
    w2 = jax.random.normal(k3, (C, Cr), jnp.float32) * 0.2     # Conv2d(C//16, C, 1, bias=False)
    w_sp = jax.random.normal(k4, (2, 7, 7), jnp.float32) * 0.1 # Conv2d(2, 1, 7, pad=3) weight
    b_sp = jax.random.normal(k5, (1,), jnp.float32) * 0.1      # its bias

    out = jax.block_until_ready(jax.jit(cbam_forward)(x, w1, w2, w_sp, b_sp))
    ref = jax.block_until_ready(cbam_reference(x, w1, w2, w_sp, b_sp))
    np.testing.assert_allclose(np.asarray(out), np.asarray(ref), rtol=1e-4, atol=1e-4)
    print("KERNEL_OK")
</pallas_src>

<mosaic_0001>
module attributes {stable_mosaic.version = 11 : i64} {
  func.func @_cbam_kernel(%arg0: i32, %arg1: memref<1x32x256xf32, #tpu.memory_space<vmem>>, %arg2: memref<2x32xf32, #tpu.memory_space<vmem>>, %arg3: memref<32x2xf32, #tpu.memory_space<vmem>>, %arg4: memref<2x49xf32, #tpu.memory_space<vmem>>, %arg5: memref<1xf32, #tpu.memory_space<smem>>, %arg6: memref<1x32x256xf32, #tpu.memory_space<vmem>>) attributes {dimension_semantics = [#tpu.dimension_semantics<parallel>], iteration_bounds = array<i64: 2>, scalar_prefetch = 0 : i64, scratch_operands = 0 : i64, tpu.core_type = #tpu.core_type<tc>, window_params = [{transform_indices = @transform_0, window_bounds = array<i64: 1, 32, 256>}, {pipeline_mode = #tpu.pipeline_mode<synchronous>, transform_indices = @transform_1, window_bounds = array<i64: 2, 32>}, {pipeline_mode = #tpu.pipeline_mode<synchronous>, transform_indices = @transform_2, window_bounds = array<i64: 32, 2>}, {pipeline_mode = #tpu.pipeline_mode<synchronous>, transform_indices = @transform_3, window_bounds = array<i64: 2, 49>}, {transform_indices = @transform_4, window_bounds = array<i64: 1>}, {transform_indices = @transform_5, window_bounds = array<i64: 1, 32, 256>}]} {
    %c0 = arith.constant 0 : index
    %c0_0 = arith.constant 0 : index
    %0 = vector.load %arg2[%c0, %c0_0] : memref<2x32xf32, #tpu.memory_space<vmem>>, vector<2x32xf32>
    %c0_1 = arith.constant 0 : index
    %c0_2 = arith.constant 0 : index
    %1 = vector.load %arg3[%c0_1, %c0_2] : memref<32x2xf32, #tpu.memory_space<vmem>>, vector<32x2xf32>
    %c0_3 = arith.constant 0 : index
    %c0_4 = arith.constant 0 : index
    %2 = vector.load %arg4[%c0_3, %c0_4] : memref<2x49xf32, #tpu.memory_space<vmem>>, vector<2x49xf32>
    %c0_5 = arith.constant 0 : index
    %3 = memref.load %arg5[%c0_5] : memref<1xf32, #tpu.memory_space<smem>>
    %cst = arith.constant 3.906250e-03 : f32
    %4 = vector.broadcast %cst : f32 to vector<256x1xf32>
    %cst_6 = arith.constant 3.125000e-02 : f32
    %5 = vector.broadcast %cst_6 : f32 to vector<1x32xf32>
    %6 = tpu.iota {dimensions = array<i32: 1>} : vector<1x256xi32>
    %c16_i32 = arith.constant 16 : i32
    %c0_i32 = arith.constant 0 : i32
    %7 = arith.cmpi eq, %c16_i32, %c0_i32 : i32
    %c1_i32 = arith.constant 1 : i32
    %8 = arith.select %7, %c1_i32, %c16_i32 : i32
    %9 = vector.broadcast %8 : i32 to vector<1x256xi32>
    %10 = arith.remsi %6, %9 : vector<1x256xi32>
    %c0_i32_7 = arith.constant 0 : i32
    %11 = vector.broadcast %c0_i32_7 : i32 to vector<1x256xi32>
    %12 = arith.cmpi ne, %10, %11 : vector<1x256xi32>
    %c0_i32_8 = arith.constant 0 : i32
    %13 = vector.broadcast %c0_i32_8 : i32 to vector<1x256xi32>
    %14 = arith.cmpi slt, %10, %13 : vector<1x256xi32>
    %c0_i32_9 = arith.constant 0 : i32
    %15 = arith.cmpi slt, %8, %c0_i32_9 : i32
    %16 = vector.broadcast %15 : i1 to vector<1x256xi1>
    %17 = vector.broadcast %16 : vector<1x256xi1> to vector<1x256xi1>
    %18 = arith.xori %14, %17 : vector<1x256xi1>
    %19 = arith.andi %18, %12 : vector<1x256xi1>
    %20 = vector.broadcast %8 : i32 to vector<1x256xi32>
    %21 = arith.addi %10, %20 : vector<1x256xi32>
    %22 = arith.select %19, %21, %10 : vector<1x256xi1>, vector<1x256xi32>
    %c-3_i32 = arith.constant -3 : i32
    %23 = vector.broadcast %c-3_i32 : i32 to vector<1x256xi32>
    %24 = arith.addi %22, %23 : vector<1x256xi32>
    %c0_i32_10 = arith.constant 0 : i32
    %25 = vector.broadcast %c0_i32_10 : i32 to vector<1x256xi32>
    %26 = arith.cmpi sge, %24, %25 : vector<1x256xi32>
    %c-3_i32_11 = arith.constant -3 : i32
    %27 = vector.broadcast %c-3_i32_11 : i32 to vector<1x256xi32>
    %28 = arith.addi %22, %27 : vector<1x256xi32>
    %c16_i32_12 = arith.constant 16 : i32
    %29 = vector.broadcast %c16_i32_12 : i32 to vector<1x256xi32>
    %30 = arith.cmpi slt, %28, %29 : vector<1x256xi32>
    %31 = arith.andi %26, %30 : vector<1x256xi1>
    %c-2_i32 = arith.constant -2 : i32
    %32 = vector.broadcast %c-2_i32 : i32 to vector<1x256xi32>
    %33 = arith.addi %22, %32 : vector<1x256xi32>
    %c0_i32_13 = arith.constant 0 : i32
    %34 = vector.broadcast %c0_i32_13 : i32 to vector<1x256xi32>
    %35 = arith.cmpi sge, %33, %34 : vector<1x256xi32>
    %c-2_i32_14 = arith.constant -2 : i32
    %36 = vector.broadcast %c-2_i32_14 : i32 to vector<1x256xi32>
    %37 = arith.addi %22, %36 : vector<1x256xi32>
    %c16_i32_15 = arith.constant 16 : i32
    %38 = vector.broadcast %c16_i32_15 : i32 to vector<1x256xi32>
    %39 = arith.cmpi slt, %37, %38 : vector<1x256xi32>
    %40 = arith.andi %35, %39 : vector<1x256xi1>
    %c-1_i32 = arith.constant -1 : i32
    %41 = vector.broadcast %c-1_i32 : i32 to vector<1x256xi32>
    %42 = arith.addi %22, %41 : vector<1x256xi32>
    %c0_i32_16 = arith.constant 0 : i32
    %43 = vector.broadcast %c0_i32_16 : i32 to vector<1x256xi32>
    %44 = arith.cmpi sge, %42, %43 : vector<1x256xi32>
    %c-1_i32_17 = arith.constant -1 : i32
    %45 = vector.broadcast %c-1_i32_17 : i32 to vector<1x256xi32>
    %46 = arith.addi %22, %45 : vector<1x256xi32>
    %c16_i32_18 = arith.constant 16 : i32
    %47 = vector.broadcast %c16_i32_18 : i32 to vector<1x256xi32>
    %48 = arith.cmpi slt, %46, %47 : vector<1x256xi32>
    %49 = arith.andi %44, %48 : vector<1x256xi1>
    %c0_i32_19 = arith.constant 0 : i32
    %50 = vector.broadcast %c0_i32_19 : i32 to vector<1x256xi32>
    %51 = arith.addi %22, %50 : vector<1x256xi32>
    %c0_i32_20 = arith.constant 0 : i32
    %52 = vector.broadcast %c0_i32_20 : i32 to vector<1x256xi32>
    %53 = arith.cmpi sge, %51, %52 : vector<1x256xi32>
    %c0_i32_21 = arith.constant 0 : i32
    %54 = vector.broadcast %c0_i32_21 : i32 to vector<1x256xi32>
    %55 = arith.addi %22, %54 : vector<1x256xi32>
    %c16_i32_22 = arith.constant 16 : i32
    %56 = vector.broadcast %c16_i32_22 : i32 to vector<1x256xi32>
    %57 = arith.cmpi slt, %55, %56 : vector<1x256xi32>
    %58 = arith.andi %53, %57 : vector<1x256xi1>
    %c1_i32_23 = arith.constant 1 : i32
    %59 = vector.broadcast %c1_i32_23 : i32 to vector<1x256xi32>
    %60 = arith.addi %22, %59 : vector<1x256xi32>
    %c0_i32_24 = arith.constant 0 : i32
    %61 = vector.broadcast %c0_i32_24 : i32 to vector<1x256xi32>
    %62 = arith.cmpi sge, %60, %61 : vector<1x256xi32>
    %c1_i32_25 = arith.constant 1 : i32
    %63 = vector.broadcast %c1_i32_25 : i32 to vector<1x256xi32>
    %64 = arith.addi %22, %63 : vector<1x256xi32>
    %c16_i32_26 = arith.constant 16 : i32
    %65 = vector.broadcast %c16_i32_26 : i32 to vector<1x256xi32>
    %66 = arith.cmpi slt, %64, %65 : vector<1x256xi32>
    %67 = arith.andi %62, %66 : vector<1x256xi1>
    %c2_i32 = arith.constant 2 : i32
    %68 = vector.broadcast %c2_i32 : i32 to vector<1x256xi32>
    %69 = arith.addi %22, %68 : vector<1x256xi32>
    %c0_i32_27 = arith.constant 0 : i32
    %70 = vector.broadcast %c0_i32_27 : i32 to vector<1x256xi32>
    %71 = arith.cmpi sge, %69, %70 : vector<1x256xi32>
    %c2_i32_28 = arith.constant 2 : i32
    %72 = vector.broadcast %c2_i32_28 : i32 to vector<1x256xi32>
    %73 = arith.addi %22, %72 : vector<1x256xi32>
    %c16_i32_29 = arith.constant 16 : i32
    %74 = vector.broadcast %c16_i32_29 : i32 to vector<1x256xi32>
    %75 = arith.cmpi slt, %73, %74 : vector<1x256xi32>
    %76 = arith.andi %71, %75 : vector<1x256xi1>
    %c3_i32 = arith.constant 3 : i32
    %77 = vector.broadcast %c3_i32 : i32 to vector<1x256xi32>
    %78 = arith.addi %22, %77 : vector<1x256xi32>
    %c0_i32_30 = arith.constant 0 : i32
    %79 = vector.broadcast %c0_i32_30 : i32 to vector<1x256xi32>
    %80 = arith.cmpi sge, %78, %79 : vector<1x256xi32>
    %c3_i32_31 = arith.constant 3 : i32
    %81 = vector.broadcast %c3_i32_31 : i32 to vector<1x256xi32>
    %82 = arith.addi %22, %81 : vector<1x256xi32>
    %c16_i32_32 = arith.constant 16 : i32
    %83 = vector.broadcast %c16_i32_32 : i32 to vector<1x256xi32>
    %84 = arith.cmpi slt, %82, %83 : vector<1x256xi32>
    %85 = arith.andi %80, %84 : vector<1x256xi1>
    %cst_33 = arith.constant 0.000000e+00 : f32
    %86 = vector.broadcast %cst_33 : f32 to vector<2x51xf32>
    %c0_i32_34 = arith.constant 0 : i32
    %c1_i32_35 = arith.constant 1 : i32
    %87 = arith.muli %c0_i32_34, %c1_i32_35 : i32
    %c0_i32_36 = arith.constant 0 : i32
    %88 = arith.addi %c0_i32_36, %87 : i32
    %89 = arith.index_cast %88 : i32 to index
    %c0_37 = arith.constant 0 : index
    %c0_38 = arith.constant 0 : index
    %90 = vector.load %arg1[%89, %c0_37, %c0_38] : memref<1x32x256xf32, #tpu.memory_space<vmem>>, vector<1x32x256xf32>
    %91 = vector.shape_cast %90 : vector<1x32x256xf32> to vector<32x256xf32>
    %cst_39 = arith.constant dense<0.000000e+00> : vector<32x1xf32>
    %92 = tpu.matmul %91, %4, %cst_39 {dimension_numbers = #tpu.dot_dimension_numbers<[1], [0], [0], [1], [0, 0, 1, 1], [], []>} : vector<32x256xf32>, vector<256x1xf32>, vector<32x1xf32> -> vector<32x1xf32>
    %cst_40 = arith.constant dense<0xFF800000> : vector<32xf32>
    %93 = vector.multi_reduction <maximumf>, %91, %cst_40 [1] : vector<32x256xf32> to vector<32xf32>
    %94 = vector.shape_cast %93 : vector<32xf32> to vector<32x1xf32>
    %95 = tpu.concatenate %92, %94 in 1 : vector<32x1xf32>, vector<32x1xf32> -> vector<32x2xf32>
    %cst_41 = arith.constant dense<0.000000e+00> : vector<2x2xf32>
    %96 = tpu.matmul %0, %95, %cst_41 {dimension_numbers = #tpu.dot_dimension_numbers<[1], [0], [0], [1], [0, 0, 1, 1], [], []>} : vector<2x32xf32>, vector<32x2xf32>, vector<2x2xf32> -> vector<2x2xf32>
    %cst_42 = arith.constant 0.000000e+00 : f32
    %97 = vector.broadcast %cst_42 : f32 to vector<2x2xf32>
    %98 = arith.maximumf %96, %97 : vector<2x2xf32>
    %cst_43 = arith.constant dense<0.000000e+00> : vector<32x2xf32>
    %99 = tpu.matmul %1, %98, %cst_43 {dimension_numbers = #tpu.dot_dimension_numbers<[1], [0], [0], [1], [0, 0, 1, 1], [], []>} : vector<32x2xf32>, vector<2x2xf32>, vector<32x2xf32> -> vector<32x2xf32>
    %100 = vector.extract_strided_slice %99 {offsets = [0, 0], sizes = [32, 1], strides = [1, 1]} : vector<32x2xf32> to vector<32x1xf32>
    %101 = vector.extract_strided_slice %99 {offsets = [0, 1], sizes = [32, 1], strides = [1, 1]} : vector<32x2xf32> to vector<32x1xf32>
    %102 = arith.addf %100, %101 : vector<32x1xf32>
    %103 = arith.negf %102 : vector<32x1xf32>
    %104 = math.exp %103 : vector<32x1xf32>
    %cst_44 = arith.constant 1.000000e+00 : f32
    %105 = vector.broadcast %cst_44 : f32 to vector<32x1xf32>
    %106 = arith.addf %105, %104 : vector<32x1xf32>
    %107 = arith.divf %105, %106 : vector<32x1xf32>
    %108 = vector.broadcast %107 : vector<32x1xf32> to vector<32x256xf32>
    %109 = arith.mulf %91, %108 : vector<32x256xf32>
    %110 = arith.index_cast %88 : i32 to index
    %c0_45 = arith.constant 0 : index
    %c0_46 = arith.constant 0 : index
    %111 = vector.load %arg6[%110, %c0_45, %c0_46] : memref<1x32x256xf32, #tpu.memory_space<vmem>>, vector<1x32x256xf32>
    %112 = vector.shape_cast %111 : vector<1x32x256xf32> to vector<32x256xf32>
    %113 = vector.shape_cast %109 : vector<32x256xf32> to vector<1x32x256xf32>
    tpu.vector_store %arg6[%110, %c0_45, %c0_46], %113 {strides = array<i32>} : memref<1x32x256xf32, #tpu.memory_space<vmem>>, vector<1x32x256xf32>,
    %114 = arith.index_cast %88 : i32 to index
    %c0_47 = arith.constant 0 : index
    %c0_48 = arith.constant 0 : index
    %115 = vector.load %arg6[%114, %c0_47, %c0_48] : memref<1x32x256xf32, #tpu.memory_space<vmem>>, vector<1x32x256xf32>
    %116 = vector.shape_cast %115 : vector<1x32x256xf32> to vector<32x256xf32>
    %cst_49 = arith.constant dense<0.000000e+00> : vector<1x256xf32>
    %117 = tpu.matmul %5, %116, %cst_49 {dimension_numbers = #tpu.dot_dimension_numbers<[1], [0], [0], [1], [0, 0, 1, 1], [], []>} : vector<1x32xf32>, vector<32x256xf32>, vector<1x256xf32> -> vector<1x256xf32>
    %cst_50 = arith.constant dense<0xFF800000> : vector<256xf32>
    %118 = vector.multi_reduction <maximumf>, %116, %cst_50 [0] : vector<32x256xf32> to vector<256xf32>
    %119 = vector.shape_cast %118 : vector<256xf32> to vector<1x256xf32>
    %120 = tpu.concatenate %117, %119 in 0 : vector<1x256xf32>, vector<1x256xf32> -> vector<2x256xf32>
    %121 = tpu.concatenate %86, %120, %86 in 1 : vector<2x51xf32>, vector<2x256xf32>, vector<2x51xf32> -> vector<2x358xf32>
    %cst_51 = arith.constant 0.000000e+00 : f32
    %122 = vector.broadcast %cst_51 : f32 to vector<2x256xf32>
    %cst_52 = arith.constant 0.000000e+00 : f32
    %123 = vector.broadcast %cst_52 : f32 to vector<2x256xf32>
    %cst_53 = arith.constant 0.000000e+00 : f32
    %124 = vector.broadcast %cst_53 : f32 to vector<2x256xf32>
    %125 = vector.extract_strided_slice %2 {offsets = [0, 0], sizes = [2, 1], strides = [1, 1]} : vector<2x49xf32> to vector<2x1xf32>
    %126 = vector.extract_strided_slice %121 {offsets = [0, 0], sizes = [2, 256], strides = [1, 1]} : vector<2x358xf32> to vector<2x256xf32>
    %127 = vector.broadcast %125 : vector<2x1xf32> to vector<2x256xf32>
    %128 = arith.mulf %127, %126 : vector<2x256xf32>
    %129 = arith.addf %124, %128 : vector<2x256xf32>
    %130 = vector.extract_strided_slice %2 {offsets = [0, 7], sizes = [2, 1], strides = [1, 1]} : vector<2x49xf32> to vector<2x1xf32>
    %131 = vector.extract_strided_slice %121 {offsets = [0, 16], sizes = [2, 256], strides = [1, 1]} : vector<2x358xf32> to vector<2x256xf32>
    %132 = vector.broadcast %130 : vector<2x1xf32> to vector<2x256xf32>
    %133 = arith.mulf %132, %131 : vector<2x256xf32>
    %134 = arith.addf %129, %133 : vector<2x256xf32>
    %135 = vector.extract_strided_slice %2 {offsets = [0, 14], sizes = [2, 1], strides = [1, 1]} : vector<2x49xf32> to vector<2x1xf32>
    %136 = vector.extract_strided_slice %121 {offsets = [0, 32], sizes = [2, 256], strides = [1, 1]} : vector<2x358xf32> to vector<2x256xf32>
    %137 = vector.broadcast %135 : vector<2x1xf32> to vector<2x256xf32>
    %138 = arith.mulf %137, %136 : vector<2x256xf32>
    %139 = arith.addf %134, %138 : vector<2x256xf32>
    %140 = vector.extract_strided_slice %2 {offsets = [0, 21], sizes = [2, 1], strides = [1, 1]} : vector<2x49xf32> to vector<2x1xf32>
    %141 = vector.extract_strided_slice %121 {offsets = [0, 48], sizes = [2, 256], strides = [1, 1]} : vector<2x358xf32> to vector<2x256xf32>
    %142 = vector.broadcast %140 : vector<2x1xf32> to vector<2x256xf32>
    %143 = arith.mulf %142, %141 : vector<2x256xf32>
    %144 = arith.addf %139, %143 : vector<2x256xf32>
    %145 = vector.extract_strided_slice %2 {offsets = [0, 28], sizes = [2, 1], strides = [1, 1]} : vector<2x49xf32> to vector<2x1xf32>
    %146 = vector.extract_strided_slice %121 {offsets = [0, 64], sizes = [2, 256], strides = [1, 1]} : vector<2x358xf32> to vector<2x256xf32>
    %147 = vector.broadcast %145 : vector<2x1xf32> to vector<2x256xf32>
    %148 = arith.mulf %147, %146 : vector<2x256xf32>
    %149 = arith.addf %144, %148 : vector<2x256xf32>
    %150 = vector.extract_strided_slice %2 {offsets = [0, 35], sizes = [2, 1], strides = [1, 1]} : vector<2x49xf32> to vector<2x1xf32>
    %151 = vector.extract_strided_slice %121 {offsets = [0, 80], sizes = [2, 256], strides = [1, 1]} : vector<2x358xf32> to vector<2x256xf32>
    %152 = vector.broadcast %150 : vector<2x1xf32> to vector<2x256xf32>
    %153 = arith.mulf %152, %151 : vector<2x256xf32>
    %154 = arith.addf %149, %153 : vector<2x256xf32>
    %155 = vector.extract_strided_slice %2 {offsets = [0, 42], sizes = [2, 1], strides = [1, 1]} : vector<2x49xf32> to vector<2x1xf32>
    %156 = vector.extract_strided_slice %121 {offsets = [0, 96], sizes = [2, 256], strides = [1, 1]} : vector<2x358xf32> to vector<2x256xf32>
    %157 = vector.broadcast %155 : vector<2x1xf32> to vector<2x256xf32>
    %158 = arith.mulf %157, %156 : vector<2x256xf32>
    %159 = arith.addf %154, %158 : vector<2x256xf32>
    %cst_54 = arith.constant 0.000000e+00 : f32
    %160 = vector.shape_cast %31 : vector<1x256xi1> to vector<1x256xi1>
    %161 = vector.broadcast %160 : vector<1x256xi1> to vector<2x256xi1>
    %162 = vector.broadcast %cst_54 : f32 to vector<2x256xf32>
    %163 = arith.select %161, %159, %162 : vector<2x256xi1>, vector<2x256xf32>
    %164 = arith.addf %122, %163 : vector<2x256xf32>
    %cst_55 = arith.constant 0.000000e+00 : f32
    %165 = vector.broadcast %cst_55 : f32 to vector<2x256xf32>
    %166 = vector.extract_strided_slice %2 {offsets = [0, 1], sizes = [2, 1], strides = [1, 1]} : vector<2x49xf32> to vector<2x1xf32>
    %167 = vector.extract_strided_slice %121 {offsets = [0, 1], sizes = [2, 256], strides = [1, 1]} : vector<2x358xf32> to vector<2x256xf32>
    %168 = vector.broadcast %166 : vector<2x1xf32> to vector<2x256xf32>
    %169 = arith.mulf %168, %167 : vector<2x256xf32>
    %170 = arith.addf %165, %169 : vector<2x256xf32>
    %171 = vector.extract_strided_slice %2 {offsets = [0, 8], sizes = [2, 1], strides = [1, 1]} : vector<2x49xf32> to vector<2x1xf32>
    %172 = vector.extract_strided_slice %121 {offsets = [0, 17], sizes = [2, 256], strides = [1, 1]} : vector<2x358xf32> to vector<2x256xf32>
    %173 = vector.broadcast %171 : vector<2x1xf32> to vector<2x256xf32>
    %174 = arith.mulf %173, %172 : vector<2x256xf32>
    %175 = arith.addf %170, %174 : vector<2x256xf32>
    %176 = vector.extract_strided_slice %2 {offsets = [0, 15], sizes = [2, 1], strides = [1, 1]} : vector<2x49xf32> to vector<2x1xf32>
    %177 = vector.extract_strided_slice %121 {offsets = [0, 33], sizes = [2, 256], strides = [1, 1]} : vector<2x358xf32> to vector<2x256xf32>
    %178 = vector.broadcast %176 : vector<2x1xf32> to vector<2x256xf32>
    %179 = arith.mulf %178, %177 : vector<2x256xf32>
    %180 = arith.addf %175, %179 : vector<2x256xf32>
    %181 = vector.extract_strided_slice %2 {offsets = [0, 22], sizes = [2, 1], strides = [1, 1]} : vector<2x49xf32> to vector<2x1xf32>
    %182 = vector.extract_strided_slice %121 {offsets = [0, 49], sizes = [2, 256], strides = [1, 1]} : vector<2x358xf32> to vector<2x256xf32>
    %183 = vector.broadcast %181 : vector<2x1xf32> to vector<2x256xf32>
    %184 = arith.mulf %183, %182 : vector<2x256xf32>
    %185 = arith.addf %180, %184 : vector<2x256xf32>
    %186 = vector.extract_strided_slice %2 {offsets = [0, 29], sizes = [2, 1], strides = [1, 1]} : vector<2x49xf32> to vector<2x1xf32>
    %187 = vector.extract_strided_slice %121 {offsets = [0, 65], sizes = [2, 256], strides = [1, 1]} : vector<2x358xf32> to vector<2x256xf32>
    %188 = vector.broadcast %186 : vector<2x1xf32> to vector<2x256xf32>
    %189 = arith.mulf %188, %187 : vector<2x256xf32>
    %190 = arith.addf %185, %189 : vector<2x256xf32>
    %191 = vector.extract_strided_slice %2 {offsets = [0, 36], sizes = [2, 1], strides = [1, 1]} : vector<2x49xf32> to vector<2x1xf32>
    %192 = vector.extract_strided_slice %121 {offsets = [0, 81], sizes = [2, 256], strides = [1, 1]} : vector<2x358xf32> to vector<2x256xf32>
    %193 = vector.broadcast %191 : vector<2x1xf32> to vector<2x256xf32>
    %194 = arith.mulf %193, %192 : vector<2x256xf32>
    %195 = arith.addf %190, %194 : vector<2x256xf32>
    %196 = vector.extract_strided_slice %2 {offsets = [0, 43], sizes = [2, 1], strides = [1, 1]} : vector<2x49xf32> to vector<2x1xf32>
    %197 = vector.extract_strided_slice %121 {offsets = [0, 97], sizes = [2, 256], strides = [1, 1]} : vector<2x358xf32> to vector<2x256xf32>
    %198 = vector.broadcast %196 : vector<2x1xf32> to vector<2x256xf32>
    %199 = arith.mulf %198, %197 : vector<2x256xf32>
    %200 = arith.addf %195, %199 : vector<2x256xf32>
    %cst_56 = arith.constant 0.000000e+00 : f32
    %201 = vector.shape_cast %40 : vector<1x256xi1> to vector<1x256xi1>
    %202 = vector.broadcast %201 : vector<1x256xi1> to vector<2x256xi1>
    %203 = vector.broadcast %cst_56 : f32 to vector<2x256xf32>
    %204 = arith.select %202, %200, %203 : vector<2x256xi1>, vector<2x256xf32>
    %205 = arith.addf %123, %204 : vector<2x256xf32>
    %cst_57 = arith.constant 0.000000e+00 : f32
    %206 = vector.broadcast %cst_57 : f32 to vector<2x256xf32>
    %207 = vector.extract_strided_slice %2 {offsets = [0, 2], sizes = [2, 1], strides = [1, 1]} : vector<2x49xf32> to vector<2x1xf32>
    %208 = vector.extract_strided_slice %121 {offsets = [0, 2], sizes = [2, 256], strides = [1, 1]} : vector<2x358xf32> to vector<2x256xf32>
    %209 = vector.broadcast %207 : vector<2x1xf32> to vector<2x256xf32>
    %210 = arith.mulf %209, %208 : vector<2x256xf32>
    %211 = arith.addf %206, %210 : vector<2x256xf32>
    %212 = vector.extract_strided_slice %2 {offsets = [0, 9], sizes = [2, 1], strides = [1, 1]} : vector<2x49xf32> to vector<2x1xf32>
    %213 = vector.extract_strided_slice %121 {offsets = [0, 18], sizes = [2, 256], strides = [1, 1]} : vector<2x358xf32> to vector<2x256xf32>
    %214 = vector.broadcast %212 : vector<2x1xf32> to vector<2x256xf32>
    %215 = arith.mulf %214, %213 : vector<2x256xf32>
    %216 = arith.addf %211, %215 : vector<2x256xf32>
    %217 = vector.extract_strided_slice %2 {offsets = [0, 16], sizes = [2, 1], strides = [1, 1]} : vector<2x49xf32> to vector<2x1xf32>
    %218 = vector.extract_strided_slice %121 {offsets = [0, 34], sizes = [2, 256], strides = [1, 1]} : vector<2x358xf32> to vector<2x256xf32>
    %219 = vector.broadcast %217 : vector<2x1xf32> to vector<2x256xf32>
    %220 = arith.mulf %219, %218 : vector<2x256xf32>
    %221 = arith.addf %216, %220 : vector<2x256xf32>
    %222 = vector.extract_strided_slice %2 {offsets = [0, 23], sizes = [2, 1], strides = [1, 1]} : vector<2x49xf32> to vector<2x1xf32>
    %223 = vector.extract_strided_slice %121 {offsets = [0, 50], sizes = [2, 256], strides = [1, 1]} : vector<2x358xf32> to vector<2x256xf32>
    %224 = vector.broadcast %222 : vector<2x1xf32> to vector<2x256xf32>
    %225 = arith.mulf %224, %223 : vector<2x256xf32>
    %226 = arith.addf %221, %225 : vector<2x256xf32>
    %227 = vector.extract_strided_slice %2 {offsets = [0, 30], sizes = [2, 1], strides = [1, 1]} : vector<2x49xf32> to vector<2x1xf32>
    %228 = vector.extract_strided_slice %121 {offsets = [0, 66], sizes = [2, 256], strides = [1, 1]} : vector<2x358xf32> to vector<2x256xf32>
    %229 = vector.broadcast %227 : vector<2x1xf32> to vector<2x256xf32>
    %230 = arith.mulf %229, %228 : vector<2x256xf32>
    %231 = arith.addf %226, %230 : vector<2x256xf32>
    %232 = vector.extract_strided_slice %2 {offsets = [0, 37], sizes = [2, 1], strides = [1, 1]} : vector<2x49xf32> to vector<2x1xf32>
    %233 = vector.extract_strided_slice %121 {offsets = [0, 82], sizes = [2, 256], strides = [1, 1]} : vector<2x358xf32> to vector<2x256xf32>
    %234 = vector.broadcast %232 : vector<2x1xf32> to vector<2x256xf32>
    %235 = arith.mulf %234, %233 : vector<2x256xf32>
    %236 = arith.addf %231, %235 : vector<2x256xf32>
    %237 = vector.extract_strided_slice %2 {offsets = [0, 44], sizes = [2, 1], strides = [1, 1]} : vector<2x49xf32> to vector<2x1xf32>
    %238 = vector.extract_strided_slice %121 {offsets = [0, 98], sizes = [2, 256], strides = [1, 1]} : vector<2x358xf32> to vector<2x256xf32>
    %239 = vector.broadcast %237 : vector<2x1xf32> to vector<2x256xf32>
    %240 = arith.mulf %239, %238 : vector<2x256xf32>
    %241 = arith.addf %236, %240 : vector<2x256xf32>
    %cst_58 = arith.constant 0.000000e+00 : f32
    %242 = vector.shape_cast %49 : vector<1x256xi1> to vector<1x256xi1>
    %243 = vector.broadcast %242 : vector<1x256xi1> to vector<2x256xi1>
    %244 = vector.broadcast %cst_58 : f32 to vector<2x256xf32>
    %245 = arith.select %243, %241, %244 : vector<2x256xi1>, vector<2x256xf32>
    %246 = arith.addf %164, %245 : vector<2x256xf32>
    %cst_59 = arith.constant 0.000000e+00 : f32
    %247 = vector.broadcast %cst_59 : f32 to vector<2x256xf32>
    %248 = vector.extract_strided_slice %2 {offsets = [0, 3], sizes = [2, 1], strides = [1, 1]} : vector<2x49xf32> to vector<2x1xf32>
    %249 = vector.extract_strided_slice %121 {offsets = [0, 3], sizes = [2, 256], strides = [1, 1]} : vector<2x358xf32> to vector<2x256xf32>
    %250 = vector.broadcast %248 : vector<2x1xf32> to vector<2x256xf32>
    %251 = arith.mulf %250, %249 : vector<2x256xf32>
    %252 = arith.addf %247, %251 : vector<2x256xf32>
    %253 = vector.extract_strided_slice %2 {offsets = [0, 10], sizes = [2, 1], strides = [1, 1]} : vector<2x49xf32> to vector<2x1xf32>
    %254 = vector.extract_strided_slice %121 {offsets = [0, 19], sizes = [2, 256], strides = [1, 1]} : vector<2x358xf32> to vector<2x256xf32>
    %255 = vector.broadcast %253 : vector<2x1xf32> to vector<2x256xf32>
    %256 = arith.mulf %255, %254 : vector<2x256xf32>
    %257 = arith.addf %252, %256 : vector<2x256xf32>
    %258 = vector.extract_strided_slice %2 {offsets = [0, 17], sizes = [2, 1], strides = [1, 1]} : vector<2x49xf32> to vector<2x1xf32>
    %259 = vector.extract_strided_slice %121 {offsets = [0, 35], sizes = [2, 256], strides = [1, 1]} : vector<2x358xf32> to vector<2x256xf32>
    %260 = vector.broadcast %258 : vector<2x1xf32> to vector<2x256xf32>
    %261 = arith.mulf %260, %259 : vector<2x256xf32>
    %262 = arith.addf %257, %261 : vector<2x256xf32>
    %263 = vector.extract_strided_slice %2 {offsets = [0, 24], sizes = [2, 1], strides = [1, 1]} : vector<2x49xf32> to vector<2x1xf32>
    %264 = vector.extract_strided_slice %121 {offsets = [0, 51], sizes = [2, 256], strides = [1, 1]} : vector<2x358xf32> to vector<2x256xf32>
    %265 = vector.broadcast %263 : vector<2x1xf32> to vector<2x256xf32>
    %266 = arith.mulf %265, %264 : vector<2x256xf32>
    %267 = arith.addf %262, %266 : vector<2x256xf32>
    %268 = vector.extract_strided_slice %2 {offsets = [0, 31], sizes = [2, 1], strides = [1, 1]} : vector<2x49xf32> to vector<2x1xf32>
    %269 = vector.extract_strided_slice %121 {offsets = [0, 67], sizes = [2, 256], strides = [1, 1]} : vector<2x358xf32> to vector<2x256xf32>
    %270 = vector.broadcast %268 : vector<2x1xf32> to vector<2x256xf32>
    %271 = arith.mulf %270, %269 : vector<2x256xf32>
    %272 = arith.addf %267, %271 : vector<2x256xf32>
    %273 = vector.extract_strided_slice %2 {offsets = [0, 38], sizes = [2, 1], strides = [1, 1]} : vector<2x49xf32> to vector<2x1xf32>
    %274 = vector.extract_strided_slice %121 {offsets = [0, 83], sizes = [2, 256], strides = [1, 1]} : vector<2x358xf32> to vector<2x256xf32>
    %275 = vector.broadcast %273 : vector<2x1xf32> to vector<2x256xf32>
    %276 = arith.mulf %275, %274 : vector<2x256xf32>
    %277 = arith.addf %272, %276 : vector<2x256xf32>
    %278 = vector.extract_strided_slice %2 {offsets = [0, 45], sizes = [2, 1], strides = [1, 1]} : vector<2x49xf32> to vector<2x1xf32>
    %279 = vector.extract_strided_slice %121 {offsets = [0, 99], sizes = [2, 256], strides = [1, 1]} : vector<2x358xf32> to vector<2x256xf32>
    %280 = vector.broadcast %278 : vector<2x1xf32> to vector<2x256xf32>
    %281 = arith.mulf %280, %279 : vector<2x256xf32>
    %282 = arith.addf %277, %281 : vector<2x256xf32>
    %cst_60 = arith.constant 0.000000e+00 : f32
    %283 = vector.shape_cast %58 : vector<1x256xi1> to vector<1x256xi1>
    %284 = vector.broadcast %283 : vector<1x256xi1> to vector<2x256xi1>
    %285 = vector.broadcast %cst_60 : f32 to vector<2x256xf32>
    %286 = arith.select %284, %282, %285 : vector<2x256xi1>, vector<2x256xf32>
    %287 = arith.addf %205, %286 : vector<2x256xf32>
    %cst_61 = arith.constant 0.000000e+00 : f32
    %288 = vector.broadcast %cst_61 : f32 to vector<2x256xf32>
    %289 = vector.extract_strided_slice %2 {offsets = [0, 4], sizes = [2, 1], strides = [1, 1]} : vector<2x49xf32> to vector<2x1xf32>
    %290 = vector.extract_strided_slice %121 {offsets = [0, 4], sizes = [2, 256], strides = [1, 1]} : vector<2x358xf32> to vector<2x256xf32>
    %291 = vector.broadcast %289 : vector<2x1xf32> to vector<2x256xf32>
    %292 = arith.mulf %291, %290 : vector<2x256xf32>
    %293 = arith.addf %288, %292 : vector<2x256xf32>
    %294 = vector.extract_strided_slice %2 {offsets = [0, 11], sizes = [2, 1], strides = [1, 1]} : vector<2x49xf32> to vector<2x1xf32>
    %295 = vector.extract_strided_slice %121 {offsets = [0, 20], sizes = [2, 256], strides = [1, 1]} : vector<2x358xf32> to vector<2x256xf32>
    %296 = vector.broadcast %294 : vector<2x1xf32> to vector<2x256xf32>
    %297 = arith.mulf %296, %295 : vector<2x256xf32>
    %298 = arith.addf %293, %297 : vector<2x256xf32>
    %299 = vector.extract_strided_slice %2 {offsets = [0, 18], sizes = [2, 1], strides = [1, 1]} : vector<2x49xf32> to vector<2x1xf32>
    %300 = vector.extract_strided_slice %121 {offsets = [0, 36], sizes = [2, 256], strides = [1, 1]} : vector<2x358xf32> to vector<2x256xf32>
    %301 = vector.broadcast %299 : vector<2x1xf32> to vector<2x256xf32>
    %302 = arith.mulf %301, %300 : vector<2x256xf32>
    %303 = arith.addf %298, %302 : vector<2x256xf32>
    %304 = vector.extract_strided_slice %2 {offsets = [0, 25], sizes = [2, 1], strides = [1, 1]} : vector<2x49xf32> to vector<2x1xf32>
    %305 = vector.extract_strided_slice %121 {offsets = [0, 52], sizes = [2, 256], strides = [1, 1]} : vector<2x358xf32> to vector<2x256xf32>
    %306 = vector.broadcast %304 : vector<2x1xf32> to vector<2x256xf32>
    %307 = arith.mulf %306, %305 : vector<2x256xf32>
    %308 = arith.addf %303, %307 : vector<2x256xf32>
    %309 = vector.extract_strided_slice %2 {offsets = [0, 32], sizes = [2, 1], strides = [1, 1]} : vector<2x49xf32> to vector<2x1xf32>
    %310 = vector.extract_strided_slice %121 {offsets = [0, 68], sizes = [2, 256], strides = [1, 1]} : vector<2x358xf32> to vector<2x256xf32>
    %311 = vector.broadcast %309 : vector<2x1xf32> to vector<2x256xf32>
    %312 = arith.mulf %311, %310 : vector<2x256xf32>
    %313 = arith.addf %308, %312 : vector<2x256xf32>
    %314 = vector.extract_strided_slice %2 {offsets = [0, 39], sizes = [2, 1], strides = [1, 1]} : vector<2x49xf32> to vector<2x1xf32>
    %315 = vector.extract_strided_slice %121 {offsets = [0, 84], sizes = [2, 256], strides = [1, 1]} : vector<2x358xf32> to vector<2x256xf32>
    %316 = vector.broadcast %314 : vector<2x1xf32> to vector<2x256xf32>
    %317 = arith.mulf %316, %315 : vector<2x256xf32>
    %318 = arith.addf %313, %317 : vector<2x256xf32>
    %319 = vector.extract_strided_slice %2 {offsets = [0, 46], sizes = [2, 1], strides = [1, 1]} : vector<2x49xf32> to vector<2x1xf32>
    %320 = vector.extract_strided_slice %121 {offsets = [0, 100], sizes = [2, 256], strides = [1, 1]} : vector<2x358xf32> to vector<2x256xf32>
    %321 = vector.broadcast %319 : vector<2x1xf32> to vector<2x256xf32>
    %322 = arith.mulf %321, %320 : vector<2x256xf32>
    %323 = arith.addf %318, %322 : vector<2x256xf32>
    %cst_62 = arith.constant 0.000000e+00 : f32
    %324 = vector.shape_cast %67 : vector<1x256xi1> to vector<1x256xi1>
    %325 = vector.broadcast %324 : vector<1x256xi1> to vector<2x256xi1>
    %326 = vector.broadcast %cst_62 : f32 to vector<2x256xf32>
    %327 = arith.select %325, %323, %326 : vector<2x256xi1>, vector<2x256xf32>
    %328 = arith.addf %246, %327 : vector<2x256xf32>
    %cst_63 = arith.constant 0.000000e+00 : f32
    %329 = vector.broadcast %cst_63 : f32 to vector<2x256xf32>
    %330 = vector.extract_strided_slice %2 {offsets = [0, 5], sizes = [2, 1], strides = [1, 1]} : vector<2x49xf32> to vector<2x1xf32>
    %331 = vector.extract_strided_slice %121 {offsets = [0, 5], sizes = [2, 256], strides = [1, 1]} : vector<2x358xf32> to vector<2x256xf32>
    %332 = vector.broadcast %330 : vector<2x1xf32> to vector<2x256xf32>
    %333 = arith.mulf %332, %331 : vector<2x256xf32>
    %334 = arith.addf %329, %333 : vector<2x256xf32>
    %335 = vector.extract_strided_slice %2 {offsets = [0, 12], sizes = [2, 1], strides = [1, 1]} : vector<2x49xf32> to vector<2x1xf32>
    %336 = vector.extract_strided_slice %121 {offsets = [0, 21], sizes = [2, 256], strides = [1, 1]} : vector<2x358xf32> to vector<2x256xf32>
    %337 = vector.broadcast %335 : vector<2x1xf32> to vector<2x256xf32>
    %338 = arith.mulf %337, %336 : vector<2x256xf32>
    %339 = arith.addf %334, %338 : vector<2x256xf32>
    %340 = vector.extract_strided_slice %2 {offsets = [0, 19], sizes = [2, 1], strides = [1, 1]} : vector<2x49xf32> to vector<2x1xf32>
    %341 = vector.extract_strided_slice %121 {offsets = [0, 37], sizes = [2, 256], strides = [1, 1]} : vector<2x358xf32> to vector<2x256xf32>
    %342 = vector.broadcast %340 : vector<2x1xf32> to vector<2x256xf32>
    %343 = arith.mulf %342, %341 : vector<2x256xf32>
    %344 = arith.addf %339, %343 : vector<2x256xf32>
    %345 = vector.extract_strided_slice %2 {offsets = [0, 26], sizes = [2, 1], strides = [1, 1]} : vector<2x49xf32> to vector<2x1xf32>
    %346 = vector.extract_strided_slice %121 {offsets = [0, 53], sizes = [2, 256], strides = [1, 1]} : vector<2x358xf32> to vector<2x256xf32>
    %347 = vector.broadcast %345 : vector<2x1xf32> to vector<2x256xf32>
    %348 = arith.mulf %347, %346 : vector<2x256xf32>
    %349 = arith.addf %344, %348 : vector<2x256xf32>
    %350 = vector.extract_strided_slice %2 {offsets = [0, 33], sizes = [2, 1], strides = [1, 1]} : vector<2x49xf32> to vector<2x1xf32>
    %351 = vector.extract_strided_slice %121 {offsets = [0, 69], sizes = [2, 256], strides = [1, 1]} : vector<2x358xf32> to vector<2x256xf32>
    %352 = vector.broadcast %350 : vector<2x1xf32> to vector<2x256xf32>
    %353 = arith.mulf %352, %351 : vector<2x256xf32>
    %354 = arith.addf %349, %353 : vector<2x256xf32>
    %355 = vector.extract_strided_slice %2 {offsets = [0, 40], sizes = [2, 1], strides = [1, 1]} : vector<2x49xf32> to vector<2x1xf32>
    %356 = vector.extract_strided_slice %121 {offsets = [0, 85], sizes = [2, 256], strides = [1, 1]} : vector<2x358xf32> to vector<2x256xf32>
    %357 = vector.broadcast %355 : vector<2x1xf32> to vector<2x256xf32>
    %358 = arith.mulf %357, %356 : vector<2x256xf32>
    %359 = arith.addf %354, %358 : vector<2x256xf32>
    %360 = vector.extract_strided_slice %2 {offsets = [0, 47], sizes = [2, 1], strides = [1, 1]} : vector<2x49xf32> to vector<2x1xf32>
    %361 = vector.extract_strided_slice %121 {offsets = [0, 101], sizes = [2, 256], strides = [1, 1]} : vector<2x358xf32> to vector<2x256xf32>
    %362 = vector.broadcast %360 : vector<2x1xf32> to vector<2x256xf32>
    %363 = arith.mulf %362, %361 : vector<2x256xf32>
    %364 = arith.addf %359, %363 : vector<2x256xf32>
    %cst_64 = arith.constant 0.000000e+00 : f32
    %365 = vector.shape_cast %76 : vector<1x256xi1> to vector<1x256xi1>
    %366 = vector.broadcast %365 : vector<1x256xi1> to vector<2x256xi1>
    %367 = vector.broadcast %cst_64 : f32 to vector<2x256xf32>
    %368 = arith.select %366, %364, %367 : vector<2x256xi1>, vector<2x256xf32>
    %369 = arith.addf %287, %368 : vector<2x256xf32>
    %cst_65 = arith.constant 0.000000e+00 : f32
    %370 = vector.broadcast %cst_65 : f32 to vector<2x256xf32>
    %371 = vector.extract_strided_slice %2 {offsets = [0, 6], sizes = [2, 1], strides = [1, 1]} : vector<2x49xf32> to vector<2x1xf32>
    %372 = vector.extract_strided_slice %121 {offsets = [0, 6], sizes = [2, 256], strides = [1, 1]} : vector<2x358xf32> to vector<2x256xf32>
    %373 = vector.broadcast %371 : vector<2x1xf32> to vector<2x256xf32>
    %374 = arith.mulf %373, %372 : vector<2x256xf32>
    %375 = arith.addf %370, %374 : vector<2x256xf32>
    %376 = vector.extract_strided_slice %2 {offsets = [0, 13], sizes = [2, 1], strides = [1, 1]} : vector<2x49xf32> to vector<2x1xf32>
    %377 = vector.extract_strided_slice %121 {offsets = [0, 22], sizes = [2, 256], strides = [1, 1]} : vector<2x358xf32> to vector<2x256xf32>
    %378 = vector.broadcast %376 : vector<2x1xf32> to vector<2x256xf32>
    %379 = arith.mulf %378, %377 : vector<2x256xf32>
    %380 = arith.addf %375, %379 : vector<2x256xf32>
    %381 = vector.extract_strided_slice %2 {offsets = [0, 20], sizes = [2, 1], strides = [1, 1]} : vector<2x49xf32> to vector<2x1xf32>
    %382 = vector.extract_strided_slice %121 {offsets = [0, 38], sizes = [2, 256], strides = [1, 1]} : vector<2x358xf32> to vector<2x256xf32>
    %383 = vector.broadcast %381 : vector<2x1xf32> to vector<2x256xf32>
    %384 = arith.mulf %383, %382 : vector<2x256xf32>
    %385 = arith.addf %380, %384 : vector<2x256xf32>
    %386 = vector.extract_strided_slice %2 {offsets = [0, 27], sizes = [2, 1], strides = [1, 1]} : vector<2x49xf32> to vector<2x1xf32>
    %387 = vector.extract_strided_slice %121 {offsets = [0, 54], sizes = [2, 256], strides = [1, 1]} : vector<2x358xf32> to vector<2x256xf32>
    %388 = vector.broadcast %386 : vector<2x1xf32> to vector<2x256xf32>
    %389 = arith.mulf %388, %387 : vector<2x256xf32>
    %390 = arith.addf %385, %389 : vector<2x256xf32>
    %391 = vector.extract_strided_slice %2 {offsets = [0, 34], sizes = [2, 1], strides = [1, 1]} : vector<2x49xf32> to vector<2x1xf32>
    %392 = vector.extract_strided_slice %121 {offsets = [0, 70], sizes = [2, 256], strides = [1, 1]} : vector<2x358xf32> to vector<2x256xf32>
    %393 = vector.broadcast %391 : vector<2x1xf32> to vector<2x256xf32>
    %394 = arith.mulf %393, %392 : vector<2x256xf32>
    %395 = arith.addf %390, %394 : vector<2x256xf32>
    %396 = vector.extract_strided_slice %2 {offsets = [0, 41], sizes = [2, 1], strides = [1, 1]} : vector<2x49xf32> to vector<2x1xf32>
    %397 = vector.extract_strided_slice %121 {offsets = [0, 86], sizes = [2, 256], strides = [1, 1]} : vector<2x358xf32> to vector<2x256xf32>
    %398 = vector.broadcast %396 : vector<2x1xf32> to vector<2x256xf32>
    %399 = arith.mulf %398, %397 : vector<2x256xf32>
    %400 = arith.addf %395, %399 : vector<2x256xf32>
    %401 = vector.extract_strided_slice %2 {offsets = [0, 48], sizes = [2, 1], strides = [1, 1]} : vector<2x49xf32> to vector<2x1xf32>
    %402 = vector.extract_strided_slice %121 {offsets = [0, 102], sizes = [2, 256], strides = [1, 1]} : vector<2x358xf32> to vector<2x256xf32>
    %403 = vector.broadcast %401 : vector<2x1xf32> to vector<2x256xf32>
    %404 = arith.mulf %403, %402 : vector<2x256xf32>
    %405 = arith.addf %400, %404 : vector<2x256xf32>
    %cst_66 = arith.constant 0.000000e+00 : f32
    %406 = vector.shape_cast %85 : vector<1x256xi1> to vector<1x256xi1>
    %407 = vector.broadcast %406 : vector<1x256xi1> to vector<2x256xi1>
    %408 = vector.broadcast %cst_66 : f32 to vector<2x256xf32>
    %409 = arith.select %407, %405, %408 : vector<2x256xi1>, vector<2x256xf32>
    %410 = arith.addf %328, %409 : vector<2x256xf32>
    %411 = arith.addf %410, %369 : vector<2x256xf32>
    %cst_67 = arith.constant dense<0.000000e+00> : vector<256xf32>
    %412 = vector.multi_reduction <add>, %411, %cst_67 [0] : vector<2x256xf32> to vector<256xf32>
    %413 = vector.shape_cast %412 : vector<256xf32> to vector<1x256xf32>
    %414 = vector.broadcast %3 : f32 to vector<1x256xf32>
    %415 = arith.addf %413, %414 : vector<1x256xf32>
    %416 = arith.negf %415 : vector<1x256xf32>
    %417 = math.exp %416 : vector<1x256xf32>
    %cst_68 = arith.constant 1.000000e+00 : f32
    %418 = vector.broadcast %cst_68 : f32 to vector<1x256xf32>
    %419 = arith.addf %418, %417 : vector<1x256xf32>
    %420 = arith.divf %418, %419 : vector<1x256xf32>
    %421 = arith.index_cast %88 : i32 to index
    %c0_69 = arith.constant 0 : index
    %c0_70 = arith.constant 0 : index
    %422 = vector.load %arg6[%421, %c0_69, %c0_70] : memref<1x32x256xf32, #tpu.memory_space<vmem>>, vector<1x32x256xf32>
    %423 = vector.shape_cast %422 : vector<1x32x256xf32> to vector<32x256xf32>
    %424 = vector.broadcast %420 : vector<1x256xf32> to vector<32x256xf32>
    %425 = arith.mulf %423, %424 : vector<32x256xf32>
    %426 = arith.index_cast %88 : i32 to index
    %c0_71 = arith.constant 0 : index
    %c0_72 = arith.constant 0 : index
    %427 = vector.load %arg6[%426, %c0_71, %c0_72] : memref<1x32x256xf32, #tpu.memory_space<vmem>>, vector<1x32x256xf32>
    %428 = vector.shape_cast %427 : vector<1x32x256xf32> to vector<32x256xf32>
    %429 = vector.shape_cast %425 : vector<32x256xf32> to vector<1x32x256xf32>
    tpu.vector_store %arg6[%426, %c0_71, %c0_72], %429 {strides = array<i32>} : memref<1x32x256xf32, #tpu.memory_space<vmem>>, vector<1x32x256xf32>,
    %c1_i32_73 = arith.constant 1 : i32
    return
  }
  func.func @transform_0(%arg0: i32) -> (i32, i32, i32) {
    %c0_i32 = arith.constant 0 : i32
    %c0_i32_0 = arith.constant 0 : i32
    %c0_i32_1 = arith.constant 0 : i32
    return %arg0, %c0_i32, %c0_i32_0 : i32, i32, i32
  }
  func.func @transform_1(%arg0: i32) -> (i32, i32) {
    %c0_i32 = arith.constant 0 : i32
    %c0_i32_0 = arith.constant 0 : i32
    %c0_i32_1 = arith.constant 0 : i32
    return %c0_i32, %c0_i32_0 : i32, i32
  }
  func.func @transform_2(%arg0: i32) -> (i32, i32) {
    %c0_i32 = arith.constant 0 : i32
    %c0_i32_0 = arith.constant 0 : i32
    %c0_i32_1 = arith.constant 0 : i32
    return %c0_i32, %c0_i32_0 : i32, i32
  }
  func.func @transform_3(%arg0: i32) -> (i32, i32) {
    %c0_i32 = arith.constant 0 : i32
    %c0_i32_0 = arith.constant 0 : i32
    %c0_i32_1 = arith.constant 0 : i32
    return %c0_i32, %c0_i32_0 : i32, i32
  }
  func.func @transform_4(%arg0: i32) -> i32 {
    %c0_i32 = arith.constant 0 : i32
    %c0_i32_0 = arith.constant 0 : i32
    return %c0_i32 : i32
  }
  func.func @transform_5(%arg0: i32) -> (i32, i32, i32) {
    %c0_i32 = arith.constant 0 : i32
    %c0_i32_0 = arith.constant 0 : i32
    %c0_i32_1 = arith.constant 0 : i32
    return %arg0, %c0_i32, %c0_i32_0 : i32, i32, i32
  }
}

</mosaic_0001>

<llo_original>
// kernel: cbam_forward.1
$region0: #{cbam_forward.1}
  #allocation0 [shape = 'u32[]', space=smem, size = 0x4, offset = 0x4, fixed_abs, tag = 'smem constant byte address 0x4 - core index']
  #allocation1 [shape = 'u32[144,128]{1,0:T(1,128)}', space=vmem, size = 0x12000, scoped, tag = 'internal scratch']
  #allocation2 [shape = 'f32[1]{0:T(128)S(6)}', space=smem, size = 0x200, scoped, tag = 'scoped memory for cbam_forward.1']
  %s0 = inlined_call_operand.vmem [shape: f32[2,32,256], index: 0, kind: input, shape index: {}]
  %s1 = inlined_call_operand.vmem [shape: f32[2,32], index: 1, kind: input, shape index: {}]
  %s2 = inlined_call_operand.vmem [shape: f32[32,2], index: 2, kind: input, shape index: {}]
  %s3 = inlined_call_operand.vmem [shape: f32[2,49], index: 3, kind: input, shape index: {}]
  %s4 = inlined_call_operand.<no memory space> [shape: f32[1], index: 4, kind: input, shape index: {}]
  %s5 = inlined_call_operand.vmem [shape: f32[2,32,256], index: 5, kind: output, shape index: {}]
  %s6 = sld [smem:[#allocation0]]
  $region53: #{cbam_forward.1} parent=0
    _
  %s8 = ssub.s32 1, %s6
  %s9 = scalar_select 0, %s8, %s6
  %10 = sst [smem:[#allocation2]] %s4
  loop: start=0, step=1, limit=4
  $region2: #{cbam_forward.1} parent=0 // loop_pre_header
    _
  $region3: #{cbam_forward.1} parent=0 // loop_header
    %s12 = sphi 0, %s16
    %p13 = scmp.ge.s32.totalorder %s12, 4
    %s22 = sphi 0, %s24
    %s25 = sphi 0, %s22
    %s26 = sphi 0, %s25
    %s42 = sphi 0, %s26
    %s46 = sphi 0, %s46
    %s48 = sphi 0, %s46
    %s49 = sphi 0, %s48
    %s63 = sphi 0, %s49
    %s67 = sphi 0, %s67
    %s69 = sphi 0, %s67
    %s70 = sphi 0, %s69
    %s84 = sphi 0, %s70
    %s88 = sphi 0, %s88
    %s90 = sphi 0, %s88
    %s91 = sphi 0, %s90
    %s105 = sphi 0, %s91
    %s109 = sphi 0, %s109
    %s111 = sphi 0, %s109
    %s112 = sphi 0, %s111
    %s126 = sphi 0, %s112
    %s132 = sphi 0, %s134
    %s135 = sphi 0, %s132
    %s136 = sphi 0, %s135
    %s152 = sphi 0, %s136
  $region4: #{cbam_forward.1} parent=0 // loop_header_branch
    %15 = sbr.rel (%p13) target = $region8
  $region5: #{cbam_forward.1} parent=0 // loop_body
    %s17 = ssub.s32 %s12, 1
    %s18 = ssub.s32 %s12, 2
    %s19 = sadd.s32 %s12, 1
    %s20 = ssub.s32 %s12, %s19
    %p21 = scmp.eq.s32.totalorder %s20, 0
    %s23 = sadd.s32 %s22, 1
    %s24 = scalar_select %p21, %s22, %s23
    %p27 = pneg %p21
    %p28 = scmp.eq.s32.totalorder %s12, 1
    %p29 = por %p27, %p28
    %p30 = scmp.ne.s32.totalorder %s22, %s25
    %p31 = scmp.eq.s32.totalorder %s12, 0
    %p32 = por %p30, %p31
    %p33 = scmp.ne.s32.totalorder %s22, %s25
    %p34 = scmp.eq.s32.totalorder %s17, 1
    %p35 = por %p33, %p34
    %p36 = scmp.ne.s32.totalorder %s25, %s26
    %p37 = scmp.eq.s32.totalorder %s17, 0
    %p38 = por %p36, %p37
    %p39 = scmp.ne.s32.totalorder %s25, %s26
    %p40 = scmp.eq.s32.totalorder %s18, 1
    %p41 = por %p39, %p40
    %p43 = scmp.ne.s32.totalorder %s26, %s42
    %p44 = scmp.eq.s32.totalorder %s18, 0
    %p45 = por %p43, %p44
    %s47 = sadd.s32 %s46, 1
    %p50 = scmp.eq.s32.totalorder %s12, 1
    %p51 = scmp.ne.s32.totalorder %s46, %s48
    %p52 = scmp.eq.s32.totalorder %s12, 0
    %p53 = por %p51, %p52
    %p54 = scmp.ne.s32.totalorder %s46, %s48
    %p55 = scmp.eq.s32.totalorder %s17, 1
    %p56 = por %p54, %p55
    %p57 = scmp.ne.s32.totalorder %s48, %s49
    %p58 = scmp.eq.s32.totalorder %s17, 0
    %p59 = por %p57, %p58
    %p60 = scmp.ne.s32.totalorder %s48, %s49
    %p61 = scmp.eq.s32.totalorder %s18, 1
    %p62 = por %p60, %p61
    %p64 = scmp.ne.s32.totalorder %s49, %s63
    %p65 = scmp.eq.s32.totalorder %s18, 0
    %p66 = por %p64, %p65
    %s68 = sadd.s32 %s67, 1
    %p71 = scmp.eq.s32.totalorder %s12, 1
    %p72 = scmp.ne.s32.totalorder %s67, %s69
    %p73 = scmp.eq.s32.totalorder %s12, 0
    %p74 = por %p72, %p73
    %p75 = scmp.ne.s32.totalorder %s67, %s69
    %p76 = scmp.eq.s32.totalorder %s17, 1
    %p77 = por %p75, %p76
    %p78 = scmp.ne.s32.totalorder %s69, %s70
    %p79 = scmp.eq.s32.totalorder %s17, 0
    %p80 = por %p78, %p79
    %p81 = scmp.ne.s32.totalorder %s69, %s70
    %p82 = scmp.eq.s32.totalorder %s18, 1
    %p83 = por %p81, %p82
    %p85 = scmp.ne.s32.totalorder %s70, %s84
    %p86 = scmp.eq.s32.totalorder %s18, 0
    %p87 = por %p85, %p86
    %s89 = sadd.s32 %s88, 1
    %p92 = scmp.eq.s32.totalorder %s12, 1
    %p93 = scmp.ne.s32.totalorder %s88, %s90
    %p94 = scmp.eq.s32.totalorder %s12, 0
    %p95 = por %p93, %p94
    %p96 = scmp.ne.s32.totalorder %s88, %s90
    %p97 = scmp.eq.s32.totalorder %s17, 1
    %p98 = por %p96, %p97
    %p99 = scmp.ne.s32.totalorder %s90, %s91
    %p100 = scmp.eq.s32.totalorder %s17, 0
    %p101 = por %p99, %p100
    %p102 = scmp.ne.s32.totalorder %s90, %s91
    %p103 = scmp.eq.s32.totalorder %s18, 1
    %p104 = por %p102, %p103
    %p106 = scmp.ne.s32.totalorder %s91, %s105
    %p107 = scmp.eq.s32.totalorder %s18, 0
    %p108 = por %p106, %p107
    %s110 = sadd.s32 %s109, 1
    %p113 = scmp.eq.s32.totalorder %s12, 1
    %p114 = scmp.ne.s32.totalorder %s109, %s111
    %p115 = scmp.eq.s32.totalorder %s12, 0
    %p116 = por %p114, %p115
    %p117 = scmp.ne.s32.totalorder %s109, %s111
    %p118 = scmp.eq.s32.totalorder %s17, 1
    %p119 = por %p117, %p118
    %p120 = scmp.ne.s32.totalorder %s111, %s112
    %p121 = scmp.eq.s32.totalorder %s17, 0
    %p122 = por %p120, %p121
    %p123 = scmp.ne.s32.totalorder %s111, %s112
    %p124 = scmp.eq.s32.totalorder %s18, 1
    %p125 = por %p123, %p124
    %p127 = scmp.ne.s32.totalorder %s112, %s126
    %p128 = scmp.eq.s32.totalorder %s18, 0
    %p129 = por %p127, %p128
    %s130 = ssub.s32 %s12, %s19
    %p131 = scmp.eq.s32.totalorder %s130, 0
    %s133 = sadd.s32 %s132, 1
    %s134 = scalar_select %p131, %s132, %s133
    %p137 = pneg %p131
    %p138 = scmp.eq.s32.totalorder %s12, 1
    %p139 = por %p137, %p138
    %p140 = scmp.ne.s32.totalorder %s132, %s135
    %p141 = scmp.eq.s32.totalorder %s12, 0
    %p142 = por %p140, %p141
    %p143 = scmp.ne.s32.totalorder %s132, %s135
    %p144 = scmp.eq.s32.totalorder %s17, 1
    %p145 = por %p143, %p144
    %p146 = scmp.ne.s32.totalorder %s135, %s136
    %p147 = scmp.eq.s32.totalorder %s17, 0
    %p148 = por %p146, %p147
    %p149 = scmp.ne.s32.totalorder %s135, %s136
    %p150 = scmp.eq.s32.totalorder %s18, 1
    %p151 = por %p149, %p150
    %p153 = scmp.ne.s32.totalorder %s136, %s152
    %p154 = scmp.eq.s32.totalorder %s18, 0
    %p155 = por %p153, %p154
    %p156 = scmp.le.s32.totalorder 1, %s12
    %p157 = scmp.lt.s32.totalorder %s12, 3
    %p158 = pnand %p156, %p157
    %p159 = pneg %p158
    // Predicated region
    $region9: #{cbam_forward.1} parent=5 // pred_check
      _
    $region10: #{cbam_forward.1} parent=5 // pred_check_branch
      %161 = sbr.rel (%p158) target = $region12
    $region11: #{cbam_forward.1} parent=5 // pred_region
      %s162 = ssub.s32 %s12, 1
      // Predicated region
      $region13: #{cbam_forward.1} parent=11 // pred_check
        %p163 = pneg %p59
      $region14: #{cbam_forward.1} parent=11 // pred_check_branch
        %165 = sbr.rel (%p163) target = $region16
      $region15: #{cbam_forward.1} parent=11 // pred_region
        _
      $region16: #{cbam_forward.1} parent=11 // pred_fallthru
        _
      // Predicated region
      $region17: #{cbam_forward.1} parent=11 // pred_check
        %p166 = pneg %p80
      $region18: #{cbam_forward.1} parent=11 // pred_check_branch
        %168 = sbr.rel (%p166) target = $region20
      $region19: #{cbam_forward.1} parent=11 // pred_region
        _
      $region20: #{cbam_forward.1} parent=11 // pred_fallthru
        _
      // Predicated region
      $region21: #{cbam_forward.1} parent=11 // pred_check
        %p169 = pneg %p101
      $region22: #{cbam_forward.1} parent=11 // pred_check_branch
        %171 = sbr.rel (%p169) target = $region24
      $region23: #{cbam_forward.1} parent=11 // pred_region
        _
      $region24: #{cbam_forward.1} parent=11 // pred_fallthru
        _
      // Predicated region
      $region25: #{cbam_forward.1} parent=11 // pred_check
        %p172 = pneg %p122
      $region26: #{cbam_forward.1} parent=11 // pred_check_branch
        %174 = sbr.rel (%p172) target = $region28
      $region27: #{cbam_forward.1} parent=11 // pred_region
        _
      $region28: #{cbam_forward.1} parent=11 // pred_fallthru
        _
    $region12: #{cbam_forward.1} parent=5 // pred_fallthru
      _
    %p175 = scmp.lt.s32.totalorder %s12, 2
    // Predicated region
    $region29: #{cbam_forward.1} parent=5 // pred_check
      %p176 = pneg %p175
    $region30: #{cbam_forward.1} parent=5 // pred_check_branch
      %178 = sbr.rel (%p176) target = $region32
    $region31: #{cbam_forward.1} parent=5 // pred_region
      // Predicated region
      $region33: #{cbam_forward.1} parent=31 // pred_check
        %p179 = pneg %p32
      $region34: #{cbam_forward.1} parent=31 // pred_check_branch
        %181 = sbr.rel (%p179) target = $region36
      $region35: #{cbam_forward.1} parent=31 // pred_region
        %p182 = scmp.lt.s32.totalorder %s12, 1
        %s183 = scalar_select %p182, %s12, 1
        %s184 = smul.addr %s183, 8
        %s185 = smul.addr %s184, 8
        %s186 = scalar_lea.vmem %s0, %s185
      $region36: #{cbam_forward.1} parent=31 // pred_fallthru
        _
    $region32: #{cbam_forward.1} parent=5 // pred_fallthru
      _
    %p187 = scmp.le.s32.totalorder 1, %s12
    %p188 = scmp.lt.s32.totalorder %s12, 3
    %p189 = pnand %p187, %p188
    %p190 = pneg %p189
    // Predicated region
    $region37: #{cbam_forward.1} parent=5 // pred_check
      _
    $region38: #{cbam_forward.1} parent=5 // pred_check_branch
      %192 = sbr.rel (%p189) target = $region40
    $region39: #{cbam_forward.1} parent=5 // pred_region
      %s193 = ssub.s32 %s12, 1
      %p194 = scmp.lt.s32.totalorder %s17, 1
      %s195 = scalar_select %p194, %s17, 1
      %s196 = smul.addr %s195, 8
      %s197 = smul.addr %s196, 8
      %s198 = scalar_lea.vmem %s0, %s197
      %p199 = pneg %p38
      %p200 = pneg %p35
      %p201 = pneg %p59
      %p202 = pneg %p56
      %p203 = pneg %p80
      %p204 = pneg %p77
      %p205 = pneg %p101
      %p206 = pneg %p98
      %p207 = pneg %p122
      %p208 = pneg %p119
      %p209 = pneg %p148
      %p210 = pneg %p145
      %p211 = scmp.lt.s32.totalorder %s17, 1
      %s212 = scalar_select %p211, %s17, 1
      %s213 = smul.addr %s212, 8
      %s214 = smul.addr %s213, 8
      %s215 = scalar_lea.vmem %s5, %s214
      %p216 = scmp.lt.s32.totalorder %s17, 1
      %s217 = scalar_select %p216, %s17, 1
      %s218 = smul.addr %s217, 8
      %s219 = smul.addr %s218, 8
      %s220 = scalar_lea.vmem %s0, %s219
      %p221 = scmp.lt.s32.totalorder %s17, 1
      %s222 = scalar_select %p221, %s17, 1
      %s223 = smul.addr %s222, 8
      %s224 = smul.addr %s223, 8
      %s225 = scalar_lea.vmem %s5, %s224
      %v226 = vld [vmem:[%s1] sm:$0x3]
      %v227 = vld [vmem:[%s2] sm:$0xff]
      %v228 = vld [vmem:[%s2 + $0x8] sm:$0xff]
      %v229 = vld [vmem:[%s2 + $0x10] sm:$0xff]
      %v230 = vld [vmem:[%s2 + $0x18] sm:$0xff]
      %v231 = vld [vmem:[%s3] sm:$0x3]
      %s232 = sld [smem:[#allocation2]]
      %v233 = vlaneseq
      %v234 = vand.u32 %v233, 127
      %v235 = vadd.s32 %v234, 128
      %vm236 = vcmp.lt.s32.totalorder %v234, 0
      %v237 = vsub.s32 0, %v234
      %v238 = vsel %vm236, %v237, %v234
      %v239 = vshrl.u32 %v238, 4
      %v240 = vand.u32 %v238, 15
      %v241 = vsub.s32 0, %v240
      %v242 = vsel %vm236, %v241, %v240
      %vm243 = vcmp.lt.s32.totalorder %v235, 0
      %v244 = vsub.s32 0, %v235
      %v245 = vsel %vm243, %v244, %v235
      %v246 = vshrl.u32 %v245, 4
      %v247 = vand.u32 %v245, 15
      %v248 = vsub.s32 0, %v247
      %v249 = vsel %vm243, %v248, %v247
      %vm250 = vcmp.ne.s32.totalorder %v242, 0
      %vm251 = vcmp.ne.s32.totalorder %v249, 0
      %vm252 = vcmp.lt.s32.totalorder %v242, 0
      %vm253 = vcmp.lt.s32.totalorder %v249, 0
      %vm254 = vmand %vm252, %vm250
      %vm255 = vmand %vm253, %vm251
      %v256 = vadd.s32 %v242, 16
      %v257 = vadd.s32 %v249, 16
      %v258 = vsel %vm254, %v256, %v242
      %v259 = vsel %vm255, %v257, %v249
      %v260 = vadd.s32 %v258, 4294967293
      %v261 = vadd.s32 %v259, 4294967293
      %vm262 = vcmp.ge.s32.totalorder %v260, 0
      %vm263 = vcmp.ge.s32.totalorder %v261, 0
      %vm264 = vcmp.lt.s32.totalorder %v260, 16
      %vm265 = vcmp.lt.s32.totalorder %v261, 16
      %vm266 = vmand %vm262, %vm264
      %vm267 = vmand %vm263, %vm265
      %v268 = vadd.s32 %v258, 4294967294
      %v269 = vadd.s32 %v259, 4294967294
      %vm270 = vcmp.ge.s32.totalorder %v268, 0
      %vm271 = vcmp.ge.s32.totalorder %v269, 0
      %vm272 = vcmp.lt.s32.totalorder %v268, 16
      %vm273 = vcmp.lt.s32.totalorder %v269, 16
      %vm274 = vmand %vm270, %vm272
      %vm275 = vmand %vm271, %vm273
      %v276 = vadd.s32 %v258, 4294967295
      %v277 = vadd.s32 %v259, 4294967295
      %vm278 = vcmp.ge.s32.totalorder %v276, 0
      %vm279 = vcmp.ge.s32.totalorder %v277, 0
      %vm280 = vcmp.lt.s32.totalorder %v276, 16
      %vm281 = vcmp.lt.s32.totalorder %v277, 16
      %vm282 = vmand %vm278, %vm280
      %vm283 = vmand %vm279, %vm281
      %vm284 = vcmp.ge.s32.totalorder %v258, 0
      %vm285 = vcmp.ge.s32.totalorder %v259, 0
      %vm286 = vcmp.lt.s32.totalorder %v258, 16
      %vm287 = vcmp.lt.s32.totalorder %v259, 16
      %vm288 = vmand %vm284, %vm286
      %vm289 = vmand %vm285, %vm287
      %v290 = vadd.s32 %v258, 1
      %v291 = vadd.s32 %v259, 1
      %vm292 = vcmp.ge.s32.totalorder %v290, 0
      %vm293 = vcmp.ge.s32.totalorder %v291, 0
      %vm294 = vcmp.lt.s32.totalorder %v290, 16
      %vm295 = vcmp.lt.s32.totalorder %v291, 16
      %vm296 = vmand %vm292, %vm294
      %vm297 = vmand %vm293, %vm295
      %v298 = vadd.s32 %v258, 2
      %v299 = vadd.s32 %v259, 2
      %vm300 = vcmp.ge.s32.totalorder %v298, 0
      %vm301 = vcmp.ge.s32.totalorder %v299, 0
      %vm302 = vcmp.lt.s32.totalorder %v298, 16
      %vm303 = vcmp.lt.s32.totalorder %v299, 16
      %vm304 = vmand %vm300, %vm302
      %vm305 = vmand %vm301, %vm303
      %v306 = vadd.s32 %v258, 3
      %v307 = vadd.s32 %v259, 3
      %vm308 = vcmp.ge.s32.totalorder %v306, 0
      %vm309 = vcmp.ge.s32.totalorder %v307, 0
      %vm310 = vcmp.lt.s32.totalorder %v306, 16
      %vm311 = vcmp.lt.s32.totalorder %v307, 16
      %vm312 = vmand %vm308, %vm310
      %vm313 = vmand %vm309, %vm311
      %v314 = vld [vmem:[%s220] sm:$0xff]
      %v315 = vld [vmem:[%s220 + $0x8] sm:$0xff]
      %v316 = vld [vmem:[%s220 + $0x10] sm:$0xff]
      %v317 = vld [vmem:[%s220 + $0x18] sm:$0xff]
      %v318 = vld [vmem:[%s220 + $0x20] sm:$0xff]
      %v319 = vld [vmem:[%s220 + $0x28] sm:$0xff]
      %v320 = vld [vmem:[%s220 + $0x30] sm:$0xff]
      %v321 = vld [vmem:[%s220 + $0x38] sm:$0xff]
      %322 = vmatprep.subr.mxu0 0.0
      %323 = vmatpush1.msra.mxu0 0.00390625
      %324 = vmatprep.subr.mxu0 0.0
      %325 = vmatpush1.msra.mxu0 0.00390625
      %326 = vmatprep.subr.mxu0 0.0
      %327 = vmatpush1.msra.mxu0 0.00390625
      %328 = vmatprep.subr.mxu0 0.0
      %329 = vmatpush1.msra.mxu0 0.00390625
      %330 = vmatprep.subr.mxu0 0.0
      %331 = vmatpush1.msra.mxu0 0.00390625
      %332 = vmatprep.subr.mxu0 0.0
      %333 = vmatpush1.msra.mxu0 0.00390625
      %334 = vmatprep.subr.mxu0 0.0
      %335 = vmatpush1.msra.mxu0 0.00390625
      %336 = vmatprep.subr.mxu0 0.0
      %337 = vmatpush1.msra.mxu0 0.00390625
      %338 = vmatprep.subr.mxu0 0.0
      %339 = vmatpush1.msra.mxu0 0.00390625
      %340 = vmatprep.subr.mxu0 0.0
      %341 = vmatpush1.msra.mxu0 0.00390625
      %342 = vmatprep.subr.mxu0 0.0
      %343 = vmatpush1.msra.mxu0 0.00390625
      %344 = vmatprep.subr.mxu0 0.0
      %345 = vmatpush1.msra.mxu0 0.00390625
      %346 = vmatprep.subr.mxu0 0.0
      %347 = vmatpush1.msra.mxu0 0.00390625
      %348 = vmatprep.subr.mxu0 0.0
      %349 = vmatpush1.msra.mxu0 0.00390625
      %350 = vmatprep.subr.mxu0 0.0
      %351 = vmatpush1.msra.mxu0 0.00390625
      %352 = vmatprep.subr.mxu0 0.0
      %353 = vmatpush1.msra.mxu0 0.00390625
      %354 = vmatprep.subr.mxu0 0.0
      %355 = vmatpush1.msra.mxu0 0.00390625
      %356 = vmatprep.subr.mxu0 0.0
      %357 = vmatpush1.msra.mxu0 0.00390625
      %358 = vmatprep.subr.mxu0 0.0
      %359 = vmatpush1.msra.mxu0 0.00390625
      %360 = vmatprep.subr.mxu0 0.0
      %361 = vmatpush1.msra.mxu0 0.00390625
      %362 = vmatprep.subr.mxu0 0.0
      %363 = vmatpush1.msra.mxu0 0.00390625
      %364 = vmatprep.subr.mxu0 0.0
      %365 = vmatpush1.msra.mxu0 0.00390625
      %366 = vmatprep.subr.mxu0 0.0
      %367 = vmatpush1.msra.mxu0 0.00390625
      %368 = vmatprep.subr.mxu0 0.0
      %369 = vmatpush1.msra.mxu0 0.00390625
      %370 = vmatprep.subr.mxu0 0.0
      %371 = vmatpush1.msra.mxu0 0.00390625
      %372 = vmatprep.subr.mxu0 0.0
      %373 = vmatpush1.msra.mxu0 0.00390625
      %374 = vmatprep.subr.mxu0 0.0
      %375 = vmatpush1.msra.mxu0 0.00390625
      %376 = vmatprep.subr.mxu0 0.0
      %377 = vmatpush1.msra.mxu0 0.00390625
      %378 = vmatprep.subr.mxu0 0.0
      %379 = vmatpush1.msra.mxu0 0.00390625
      %380 = vmatprep.subr.mxu0 0.0
      %381 = vmatpush1.msra.mxu0 0.00390625
      %382 = vmatprep.subr.mxu0 0.0
      %383 = vmatpush1.msra.mxu0 0.00390625
      %384 = vmatprep.subr.mxu0 0.0
      %385 = vmatpush1.msra.mxu0 0.00390625
      %386 = vmatprep.mubr.f32.mxu0 %v315
      %387 = vmatmul.mubr.f32.gmra.mrb[0].mxu0 %v314
      %v388 = vpop.f32.mrb[0].mxu0
      %v389 = vadd.f32 0.0, %v388
      %v390 = vpop.f32.mrb[0].mxu0
      %391 = vmatprep.mubr.f32.mxu0 %v317
      %392 = vmatmul.mubr.f32.gmra.mrb[0].mxu0 %v316
      %v393 = vpop.f32.mrb[0].mxu0
      %v394 = vadd.f32 0.0, %v393
      %v395 = vpop.f32.mrb[0].mxu0
      %396 = vmatprep.mubr.f32.mxu0 %v319
      %397 = vmatmul.mubr.f32.gmra.mrb[0].mxu0 %v318
      %v398 = vpop.f32.mrb[0].mxu0
      %v399 = vadd.f32 0.0, %v398
      %v400 = vpop.f32.mrb[0].mxu0
      %401 = vmatprep.mubr.f32.mxu0 %v321
      %402 = vmatmul.mubr.f32.gmra.mrb[0].mxu0 %v320
      %v403 = vpop.f32.mrb[0].mxu0
      %v404 = vadd.f32 0.0, %v403
      %v405 = vpop.f32.mrb[0].mxu0
      %406 = vdwg.mxu0
      %v407 = vmax.f32 %v314, %v315
      %408 = vmax.xlane.f32.xlu0 %v407
      %v409 = vpop.xlane.xlu0 %408
      %v410 = vmax.f32 %v316, %v317
      %411 = vmax.xlane.f32.xlu0 %v410
      %v412 = vpop.xlane.xlu0 %411
      %v413 = vmax.f32 %v318, %v319
      %414 = vmax.xlane.f32.xlu0 %v413
      %v415 = vpop.xlane.xlu0 %414
      %v416 = vmax.f32 %v320, %v321
      %417 = vmax.xlane.f32.xlu0 %v416
      %v418 = vpop.xlane.xlu0 %417
      %vm419 = vcmask 7168
      %v420 = vsel %vm419, %v389, %v409
      %v421 = vsel %vm419, %v394, %v412
      %v422 = vsel %vm419, %v399, %v415
      %v423 = vsel %vm419, %v404, %v418
      %vm424 = vcmask 261120
      %v426 = vsel %vm424, %v226, 0
      %428 = vmatprep.subr.mxu0 0.0
      %429 = vmatpush1.msra.mxu0 %v420
      %430 = vmatprep.subr.mxu0 0.0
      %431 = vmatpush1.msra.mxu0 %v421
      %432 = vmatprep.subr.mxu0 0.0
      %433 = vmatpush1.msra.mxu0 %v422
      %434 = vmatprep.subr.mxu0 0.0
      %435 = vmatpush1.msra.mxu0 %v423
      %436 = vmatprep.subr.mxu0 0.0
      %437 = vmatpush1.msra.mxu0 0.0
      %438 = vmatprep.subr.mxu0 0.0
      %439 = vmatpush1.msra.mxu0 0.0
      %440 = vmatprep.subr.mxu0 0.0
      %441 = vmatpush1.msra.mxu0 0.0
      %442 = vmatprep.subr.mxu0 0.0
      %443 = vmatpush1.msra.mxu0 0.0
      %444 = vmatprep.subr.mxu0 0.0
      %445 = vmatpush1.msra.mxu0 0.0
      %446 = vmatprep.subr.mxu0 0.0
      %447 = vmatpush1.msra.mxu0 0.0
      %448 = vmatprep.subr.mxu0 0.0
      %449 = vmatpush1.msra.mxu0 0.0
      %450 = vmatprep.subr.mxu0 0.0
      %451 = vmatpush1.msra.mxu0 0.0
      %452 = vmatprep.subr.mxu0 0.0
      %453 = vmatpush1.msra.mxu0 0.0
      %454 = vmatprep.subr.mxu0 0.0
      %455 = vmatpush1.msra.mxu0 0.0
      %456 = vmatprep.subr.mxu0 0.0
      %457 = vmatpush1.msra.mxu0 0.0
      %458 = vmatprep.subr.mxu0 0.0
      %459 = vmatpush1.msra.mxu0 0.0
      %460 = vmatprep.subr.mxu0 0.0
      %461 = vmatpush1.msra.mxu0 0.0
      %462 = vmatprep.subr.mxu0 0.0
      %463 = vmatpush1.msra.mxu0 0.0
      %464 = vmatprep.subr.mxu0 0.0
      %465 = vmatpush1.msra.mxu0 0.0
      %466 = vmatprep.subr.mxu0 0.0
      %467 = vmatpush1.msra.mxu0 0.0
      %468 = vmatprep.subr.mxu0 0.0
      %469 = vmatpush1.msra.mxu0 0.0
      %470 = vmatprep.subr.mxu0 0.0
      %471 = vmatpush1.msra.mxu0 0.0
      %472 = vmatprep.subr.mxu0 0.0
      %473 = vmatpush1.msra.mxu0 0.0
      %474 = vmatprep.subr.mxu0 0.0
      %475 = vmatpush1.msra.mxu0 0.0
      %476 = vmatprep.subr.mxu0 0.0
      %477 = vmatpush1.msra.mxu0 0.0
      %478 = vmatprep.subr.mxu0 0.0
      %479 = vmatpush1.msra.mxu0 0.0
      %480 = vmatprep.subr.mxu0 0.0
      %481 = vmatpush1.msra.mxu0 0.0
      %482 = vmatprep.subr.mxu0 0.0
      %483 = vmatpush1.msra.mxu0 0.0
      %484 = vmatprep.subr.mxu0 0.0
      %485 = vmatpush1.msra.mxu0 0.0
      %486 = vmatprep.subr.mxu0 0.0
      %487 = vmatpush1.msra.mxu0 0.0
      %488 = vmatprep.subr.mxu0 0.0
      %489 = vmatpush1.msra.mxu0 0.0
      %490 = vmatprep.subr.mxu0 0.0
      %491 = vmatpush1.msra.mxu0 0.0
      %492 = vmatprep.mubr.f32.mxu0 0.0
      %493 = vmatmul.mubr.f32.gmra.mrb[0].mxu0 %v426
      %v494 = vpop.f32.mrb[0].mxu0
      %v495 = vadd.f32 0.0, %v494
      %v496 = vpop.f32.mrb[0].mxu0
      %497 = vdwg.mxu0
      %v498 = vmax.f32 %v495, 0.0
      %vm499 = vcmask 15360
      %v501 = vsel %vm499, %v227, 0
      %v504 = vsel %vm499, %v228, 0
      %v507 = vsel %vm499, %v229, 0
      %v510 = vsel %vm499, %v230, 0
      %vm512 = vcmask 1041408
      %v514 = vsel %vm512, %v498, 0
      %516 = vmatprep.subr.mxu0 0.0
      %517 = vmatpush1.msra.mxu0 %v514
      %518 = vmatprep.subr.mxu0 0.0
      %519 = vmatpush1.msra.mxu0 0.0
      %520 = vmatprep.subr.mxu0 0.0
      %521 = vmatpush1.msra.mxu0 0.0
      %522 = vmatprep.subr.mxu0 0.0
      %523 = vmatpush1.msra.mxu0 0.0
      %524 = vmatprep.subr.mxu0 0.0
      %525 = vmatpush1.msra.mxu0 0.0
      %526 = vmatprep.subr.mxu0 0.0
      %527 = vmatpush1.msra.mxu0 0.0
      %528 = vmatprep.subr.mxu0 0.0
      %529 = vmatpush1.msra.mxu0 0.0
      %530 = vmatprep.subr.mxu0 0.0
      %531 = vmatpush1.msra.mxu0 0.0
      %532 = vmatprep.subr.mxu0 0.0
      %533 = vmatpush1.msra.mxu0 0.0
      %534 = vmatprep.subr.mxu0 0.0
      %535 = vmatpush1.msra.mxu0 0.0
      %536 = vmatprep.subr.mxu0 0.0
      %537 = vmatpush1.msra.mxu0 0.0
      %538 = vmatprep.subr.mxu0 0.0
      %539 = vmatpush1.msra.mxu0 0.0
      %540 = vmatprep.subr.mxu0 0.0
      %541 = vmatpush1.msra.mxu0 0.0
      %542 = vmatprep.subr.mxu0 0.0
      %543 = vmatpush1.msra.mxu0 0.0
      %544 = vmatprep.subr.mxu0 0.0
      %545 = vmatpush1.msra.mxu0 0.0
      %546 = vmatprep.subr.mxu0 0.0
      %547 = vmatpush1.msra.mxu0 0.0
      %548 = vmatprep.subr.mxu0 0.0
      %549 = vmatpush1.msra.mxu0 0.0
      %550 = vmatprep.subr.mxu0 0.0
      %551 = vmatpush1.msra.mxu0 0.0
      %552 = vmatprep.subr.mxu0 0.0
      %553 = vmatpush1.msra.mxu0 0.0
      %554 = vmatprep.subr.mxu0 0.0
      %555 = vmatpush1.msra.mxu0 0.0
      %556 = vmatprep.subr.mxu0 0.0
      %557 = vmatpush1.msra.mxu0 0.0
      %558 = vmatprep.subr.mxu0 0.0
      %559 = vmatpush1.msra.mxu0 0.0
      %560 = vmatprep.subr.mxu0 0.0
      %561 = vmatpush1.msra.mxu0 0.0
      %562 = vmatprep.subr.mxu0 0.0
      %563 = vmatpush1.msra.mxu0 0.0
      %564 = vmatprep.subr.mxu0 0.0
      %565 = vmatpush1.msra.mxu0 0.0
      %566 = vmatprep.subr.mxu0 0.0
      %567 = vmatpush1.msra.mxu0 0.0
      %568 = vmatprep.subr.mxu0 0.0
      %569 = vmatpush1.msra.mxu0 0.0
      %570 = vmatprep.subr.mxu0 0.0
      %571 = vmatpush1.msra.mxu0 0.0
      %572 = vmatprep.subr.mxu0 0.0
      %573 = vmatpush1.msra.mxu0 0.0
      %574 = vmatprep.subr.mxu0 0.0
      %575 = vmatpush1.msra.mxu0 0.0
      %576 = vmatprep.subr.mxu0 0.0
      %577 = vmatpush1.msra.mxu0 0.0
      %578 = vmatprep.subr.mxu0 0.0
      %579 = vmatpush1.msra.mxu0 0.0
      %580 = vmatprep.mubr.f32.mxu0 0.0
      %581 = vmatmul.mubr.f32.gmra.mrb[0].mxu0 %v501
      %v582 = vpop.f32.mrb[0].mxu0
      %v583 = vadd.f32 0.0, %v582
      %v584 = vpop.f32.mrb[0].mxu0
      %585 = vmatprep.mubr.f32.mxu0 0.0
      %586 = vmatmul.mubr.f32.gmra.mrb[0].mxu0 %v504
      %v587 = vpop.f32.mrb[0].mxu0
      %v588 = vadd.f32 0.0, %v587
      %v589 = vpop.f32.mrb[0].mxu0
      %590 = vmatprep.mubr.f32.mxu0 0.0
      %591 = vmatmul.mubr.f32.gmra.mrb[0].mxu0 %v507
      %v592 = vpop.f32.mrb[0].mxu0
      %v593 = vadd.f32 0.0, %v592
      %v594 = vpop.f32.mrb[0].mxu0
      %595 = vmatprep.mubr.f32.mxu0 0.0
      %596 = vmatmul.mubr.f32.gmra.mrb[0].mxu0 %v510
      %v597 = vpop.f32.mrb[0].mxu0
      %v598 = vadd.f32 0.0, %v597
      %v599 = vpop.f32.mrb[0].mxu0
      %600 = vdwg.mxu0
      %605 = vrot.lane.b32.xlu0 %v583, 127
      %v606 = vpop.permute.xlu0 %605
      %607 = vrot.lane.b32.xlu0 %v588, 127
      %v608 = vpop.permute.xlu0 %607
      %609 = vrot.lane.b32.xlu0 %v593, 127
      %v610 = vpop.permute.xlu0 %609
      %611 = vrot.lane.b32.xlu0 %v598, 127
      %v612 = vpop.permute.xlu0 %611
      %v617 = vadd.f32 %v583, %v606
      %v618 = vadd.f32 %v588, %v608
      %v619 = vadd.f32 %v593, %v610
      %v620 = vadd.f32 %v598, %v612
      %v621 = vxor.u32 %v617, 2147483648
      %v622 = vxor.u32 %v618, 2147483648
      %v623 = vxor.u32 %v619, 2147483648
      %v624 = vxor.u32 %v620, 2147483648
      %v625 = vmul.f32 %v621, 1.442695
      %v626 = vpow.pop %v625
      %v627 = vmul.f32 %v622, 1.442695
      %v628 = vpow.pop %v627
      %v629 = vmul.f32 %v623, 1.442695
      %v630 = vpow.pop %v629
      %v631 = vmul.f32 %v624, 1.442695
      %v632 = vpow.pop %v631
      %v633 = vadd.f32 %v626, 1.0
      %v634 = vadd.f32 %v628, 1.0
      %v635 = vadd.f32 %v630, 1.0
      %v636 = vadd.f32 %v632, 1.0
      %v637 = vrcp.pop %v633
      %v638 = vmul.f32 1.0, %v637
      %v639 = vrcp.pop %v634
      %v640 = vmul.f32 1.0, %v639
      %v641 = vrcp.pop %v635
      %v642 = vmul.f32 1.0, %v641
      %v643 = vrcp.pop %v636
      %v644 = vmul.f32 1.0, %v643
      %646 = vset.pattern.permute.xlu0 0
      %647 = vperm.xlu0 %646, %v638
      %v648 = vpop.permute.xlu0 %647
      %651 = vset.pattern.permute.xlu0 0
      %652 = vperm.xlu0 %651, %v640
      %v653 = vpop.permute.xlu0 %652
      %656 = vset.pattern.permute.xlu0 0
      %657 = vperm.xlu0 %656, %v642
      %v658 = vpop.permute.xlu0 %657
      %661 = vset.pattern.permute.xlu0 0
      %662 = vperm.xlu0 %661, %v644
      %v663 = vpop.permute.xlu0 %662
      %v665 = vmul.f32 %v314, %v648
      %v666 = vmul.f32 %v315, %v648
      %v667 = vmul.f32 %v316, %v653
      %v668 = vmul.f32 %v317, %v653
      %v669 = vmul.f32 %v318, %v658
      %v670 = vmul.f32 %v319, %v658
      %v671 = vmul.f32 %v320, %v663
      %v672 = vmul.f32 %v321, %v663
      %673 = vst [vmem:[%s225] sm:$0xff] %v665
      %674 = vst [vmem:[%s225 + $0x8] sm:$0xff] %v666
      %675 = vst [vmem:[%s225 + $0x10] sm:$0xff] %v667
      %676 = vst [vmem:[%s225 + $0x18] sm:$0xff] %v668
      %677 = vst [vmem:[%s225 + $0x20] sm:$0xff] %v669
      %678 = vst [vmem:[%s225 + $0x28] sm:$0xff] %v670
      %679 = vst [vmem:[%s225 + $0x30] sm:$0xff] %v671
      %680 = vst [vmem:[%s225 + $0x38] sm:$0xff] %v672
      %v681 = vld [vmem:[%s225] sm:$0xff]
      %v682 = vld [vmem:[%s225 + $0x8] sm:$0xff]
      %v683 = vld [vmem:[%s225 + $0x10] sm:$0xff]
      %v684 = vld [vmem:[%s225 + $0x18] sm:$0xff]
      %v685 = vld [vmem:[%s225 + $0x20] sm:$0xff]
      %v686 = vld [vmem:[%s225 + $0x28] sm:$0xff]
      %v687 = vld [vmem:[%s225 + $0x30] sm:$0xff]
      %v688 = vld [vmem:[%s225 + $0x38] sm:$0xff]
      %v690 = vsel %vm424, 0.03125, 0
      %692 = vmatprep.subr.mxu0 %v682
      %693 = vmatpush1.msra.mxu0 %v681
      %694 = vmatprep.subr.mxu0 %v684
      %695 = vmatpush1.msra.mxu0 %v683
      %696 = vmatprep.subr.mxu0 %v686
      %697 = vmatpush1.msra.mxu0 %v685
      %698 = vmatprep.subr.mxu0 %v688
      %699 = vmatpush1.msra.mxu0 %v687
      %700 = vmatprep.subr.mxu0 0.0
      %701 = vmatpush1.msra.mxu0 0.0
      %702 = vmatprep.subr.mxu0 0.0
      %703 = vmatpush1.msra.mxu0 0.0
      %704 = vmatprep.subr.mxu0 0.0
      %705 = vmatpush1.msra.mxu0 0.0
      %706 = vmatprep.subr.mxu0 0.0
      %707 = vmatpush1.msra.mxu0 0.0
      %708 = vmatprep.subr.mxu0 0.0
      %709 = vmatpush1.msra.mxu0 0.0
      %710 = vmatprep.subr.mxu0 0.0
      %711 = vmatpush1.msra.mxu0 0.0
      %712 = vmatprep.subr.mxu0 0.0
      %713 = vmatpush1.msra.mxu0 0.0
      %714 = vmatprep.subr.mxu0 0.0
      %715 = vmatpush1.msra.mxu0 0.0
      %716 = vmatprep.subr.mxu0 0.0
      %717 = vmatpush1.msra.mxu0 0.0
      %718 = vmatprep.subr.mxu0 0.0
      %719 = vmatpush1.msra.mxu0 0.0
      %720 = vmatprep.subr.mxu0 0.0
      %721 = vmatpush1.msra.mxu0 0.0
      %722 = vmatprep.subr.mxu0 0.0
      %723 = vmatpush1.msra.mxu0 0.0
      %724 = vmatprep.subr.mxu0 0.0
      %725 = vmatpush1.msra.mxu0 0.0
      %726 = vmatprep.subr.mxu0 0.0
      %727 = vmatpush1.msra.mxu0 0.0
      %728 = vmatprep.subr.mxu0 0.0
      %729 = vmatpush1.msra.mxu0 0.0
      %730 = vmatprep.subr.mxu0 0.0
      %731 = vmatpush1.msra.mxu0 0.0
      %732 = vmatprep.subr.mxu0 0.0
      %733 = vmatpush1.msra.mxu0 0.0
      %734 = vmatprep.subr.mxu0 0.0
      %735 = vmatpush1.msra.mxu0 0.0
      %736 = vmatprep.subr.mxu0 0.0
      %737 = vmatpush1.msra.mxu0 0.0
      %738 = vmatprep.subr.mxu0 0.0
      %739 = vmatpush1.msra.mxu0 0.0
      %740 = vmatprep.subr.mxu0 0.0
      %741 = vmatpush1.msra.mxu0 0.0
      %742 = vmatprep.subr.mxu0 0.0
      %743 = vmatpush1.msra.mxu0 0.0
      %744 = vmatprep.subr.mxu0 0.0
      %745 = vmatpush1.msra.mxu0 0.0
      %746 = vmatprep.subr.mxu0 0.0
      %747 = vmatpush1.msra.mxu0 0.0
      %748 = vmatprep.subr.mxu0 0.0
      %749 = vmatpush1.msra.mxu0 0.0
      %750 = vmatprep.subr.mxu0 0.0
      %751 = vmatpush1.msra.mxu0 0.0
      %752 = vmatprep.subr.mxu0 0.0
      %753 = vmatpush1.msra.mxu0 0.0
      %754 = vmatprep.subr.mxu0 0.0
      %755 = vmatpush1.msra.mxu0 0.0
      %756 = vmatprep.mubr.f32.mxu0 0.0
      %757 = vmatmul.mubr.f32.gmra.mrb[0].mxu0 %v690
      %v758 = vpop.f32.mrb[0].mxu0
      %v759 = vadd.f32 0.0, %v758
      %v760 = vpop.f32.mrb[0].mxu0
      %v761 = vadd.f32 0.0, %v760
      %762 = vdwg.mxu0
      %v763 = vmax.f32 %v681, %v685
      %v764 = vmax.f32 %v683, %v687
      %v765 = vmax.f32 %v763, %v764
      %v766 = vrot.slane %v765, 4
      %v767 = vmax.f32 %v765, %v766
      %v768 = vrot.slane %v767, 2
      %v769 = vmax.f32 %v767, %v768
      %v770 = vrot.slane %v769, 1
      %v771 = vmax.f32 %v769, %v770
      %v772 = vmax.f32 %v682, %v686
      %v773 = vmax.f32 %v684, %v688
      %v774 = vmax.f32 %v772, %v773
      %v775 = vrot.slane %v774, 4
      %v776 = vmax.f32 %v774, %v775
      %v777 = vrot.slane %v776, 2
      %v778 = vmax.f32 %v776, %v777
      %v779 = vrot.slane %v778, 1
      %v780 = vmax.f32 %v778, %v779
      %vm781 = vcmask 1040384
      %v782 = vsel %vm781, %v759, %v771
      %v783 = vsel %vm781, %v761, %v780
      %786 = vrot.lane.b32.xlu0 %v782, 51
      %v787 = vpop.permute.xlu0 %786
      %788 = vrot.lane.b32.xlu0 %v783, 51
      %v789 = vpop.permute.xlu0 %788
      %vm790 = vcmask 416768
      %v791 = vsel %vm790, %v787, %v789
      %v795 = vsel %vm790, 0.0, %v787
      %v796 = vsel %vm790, %v789, 0.0
      %798 = vset.pattern.permute.xlu0 0
      %799 = vperm.xlu0 %798, %v231
      %v800 = vpop.permute.xlu0 %799
      %v802 = vmul.f32 %v800, %v795
      %v803 = vmul.f32 %v800, %v791
      %v804 = vadd.f32 %v802, 0.0
      %v805 = vadd.f32 %v803, 0.0
      %806 = vset.pattern.permute.xlu0 7
      %807 = vperm.xlu0 %806, %v231
      %v808 = vpop.permute.xlu0 %807
      %v810 = vmul.f32 %v808, %v795
      %v811 = vmul.f32 %v808, %v791
      %v812 = vmul.f32 %v808, %v796
      %816 = vrot.lane.b32.xlu0 %v810, 112
      %v817 = vpop.permute.xlu0 %816
      %818 = vrot.lane.b32.xlu0 %v811, 112
      %v819 = vpop.permute.xlu0 %818
      %820 = vrot.lane.b32.xlu0 %v812, 112
      %v821 = vpop.permute.xlu0 %820
      %vm822 = vcmask 916480
      %v823 = vsel %vm822, %v817, %v819
      %v824 = vsel %vm822, %v819, %v821
      %v827 = vadd.f32 %v804, %v823
      %v828 = vadd.f32 %v805, %v824
      %829 = vset.pattern.permute.xlu0 14
      %830 = vperm.xlu0 %829, %v231
      %v831 = vpop.permute.xlu0 %830
      %v833 = vmul.f32 %v831, %v795
      %v834 = vmul.f32 %v831, %v791
      %v835 = vmul.f32 %v831, %v796
      %839 = vrot.lane.b32.xlu0 %v833, 96
      %v840 = vpop.permute.xlu0 %839
      %841 = vrot.lane.b32.xlu0 %v834, 96
      %v842 = vpop.permute.xlu0 %841
      %843 = vrot.lane.b32.xlu0 %v835, 96
      %v844 = vpop.permute.xlu0 %843
      %vm845 = vcmask 785408
      %v846 = vsel %vm845, %v840, %v842
      %v847 = vsel %vm845, %v842, %v844
      %v850 = vadd.f32 %v827, %v846
      %v851 = vadd.f32 %v828, %v847
      %852 = vset.pattern.permute.xlu0 21
      %853 = vperm.xlu0 %852, %v231
      %v854 = vpop.permute.xlu0 %853
      %v856 = vmul.f32 %v854, %v795
      %v857 = vmul.f32 %v854, %v791
      %v858 = vmul.f32 %v854, %v796
      %862 = vrot.lane.b32.xlu0 %v856, 80
      %v863 = vpop.permute.xlu0 %862
      %864 = vrot.lane.b32.xlu0 %v857, 80
      %v865 = vpop.permute.xlu0 %864
      %866 = vrot.lane.b32.xlu0 %v858, 80
      %v867 = vpop.permute.xlu0 %866
      %vm868 = vcmask 654336
      %v869 = vsel %vm868, %v863, %v865
      %v870 = vsel %vm868, %v865, %v867
      %v873 = vadd.f32 %v850, %v869
      %v874 = vadd.f32 %v851, %v870
      %875 = vset.pattern.permute.xlu0 28
      %876 = vperm.xlu0 %875, %v231
      %v877 = vpop.permute.xlu0 %876
      %v879 = vmul.f32 %v877, %v795
      %v880 = vmul.f32 %v877, %v791
      %v881 = vmul.f32 %v877, %v796
      %885 = vrot.lane.b32.xlu0 %v879, 64
      %v886 = vpop.permute.xlu0 %885
      %887 = vrot.lane.b32.xlu0 %v880, 64
      %v888 = vpop.permute.xlu0 %887
      %889 = vrot.lane.b32.xlu0 %v881, 64
      %v890 = vpop.permute.xlu0 %889
      %vm891 = vcmask 523264
      %v892 = vsel %vm891, %v886, %v888
      %v893 = vsel %vm891, %v888, %v890
      %v896 = vadd.f32 %v873, %v892
      %v897 = vadd.f32 %v874, %v893
      %898 = vset.pattern.permute.xlu0 35
      %899 = vperm.xlu0 %898, %v231
      %v900 = vpop.permute.xlu0 %899
      %v902 = vmul.f32 %v900, %v795
      %v903 = vmul.f32 %v900, %v791
      %v904 = vmul.f32 %v900, %v796
      %908 = vrot.lane.b32.xlu0 %v902, 48
      %v909 = vpop.permute.xlu0 %908
      %910 = vrot.lane.b32.xlu0 %v903, 48
      %v911 = vpop.permute.xlu0 %910
      %912 = vrot.lane.b32.xlu0 %v904, 48
      %v913 = vpop.permute.xlu0 %912
      %vm914 = vcmask 392192
      %v915 = vsel %vm914, %v909, %v911
      %v916 = vsel %vm914, %v911, %v913
      %v919 = vadd.f32 %v896, %v915
      %v920 = vadd.f32 %v897, %v916
      %921 = vset.pattern.permute.xlu0 42
      %922 = vperm.xlu0 %921, %v231
      %v923 = vpop.permute.xlu0 %922
      %v925 = vmul.f32 %v923, %v795
      %v926 = vmul.f32 %v923, %v791
      %v927 = vmul.f32 %v923, %v796
      %931 = vrot.lane.b32.xlu0 %v925, 32
      %v932 = vpop.permute.xlu0 %931
      %933 = vrot.lane.b32.xlu0 %v926, 32
      %v934 = vpop.permute.xlu0 %933
      %935 = vrot.lane.b32.xlu0 %v927, 32
      %v936 = vpop.permute.xlu0 %935
      %v937 = vsel %vm424, %v932, %v934
      %v938 = vsel %vm424, %v934, %v936
      %v941 = vadd.f32 %v919, %v937
      %v942 = vadd.f32 %v920, %v938
      %v943 = vsel %vm266, 1, 0
      %v944 = vsel %vm267, 1, 0
      %vm945 = vcmp.eq.s32.totalorder %v943, 1
      %vm946 = vcmp.eq.s32.totalorder %v944, 1
      %v947 = vsel %vm945, %v941, 0.0
      %v948 = vsel %vm946, %v942, 0.0
      %v949 = vadd.f32 %v947, 0.0
      %v950 = vadd.f32 %v948, 0.0
      %951 = vset.pattern.permute.xlu0 1
      %952 = vperm.xlu0 %951, %v231
      %v953 = vpop.permute.xlu0 %952
      %v955 = vmul.f32 %v953, %v795
      %v956 = vmul.f32 %v953, %v791
      %v957 = vmul.f32 %v953, %v796
      %v958 = vadd.f32 %v955, 0.0
      %v959 = vadd.f32 %v956, 0.0
      %v960 = vadd.f32 %v957, 0.0
      %961 = vset.pattern.permute.xlu0 8
      %962 = vperm.xlu0 %961, %v231
      %v963 = vpop.permute.xlu0 %962
      %v965 = vmul.f32 %v963, %v795
      %v966 = vmul.f32 %v963, %v791
      %v967 = vmul.f32 %v963, %v796
      %971 = vrot.lane.b32.xlu0 %v965, 112
      %v972 = vpop.permute.xlu0 %971
      %973 = vrot.lane.b32.xlu0 %v966, 112
      %v974 = vpop.permute.xlu0 %973
      %975 = vrot.lane.b32.xlu0 %v967, 112
      %v976 = vpop.permute.xlu0 %975
      %v977 = vsel %vm822, %v972, %v974
      %v978 = vsel %vm822, %v974, %v976
      %v982 = vadd.f32 %v958, %v977
      %v983 = vadd.f32 %v959, %v978
      %v984 = vadd.f32 %v960, %v976
      %985 = vset.pattern.permute.xlu0 15
      %986 = vperm.xlu0 %985, %v231
      %v987 = vpop.permute.xlu0 %986
      %v989 = vmul.f32 %v987, %v795
      %v990 = vmul.f32 %v987, %v791
      %v991 = vmul.f32 %v987, %v796
      %995 = vrot.lane.b32.xlu0 %v989, 96
      %v996 = vpop.permute.xlu0 %995
      %997 = vrot.lane.b32.xlu0 %v990, 96
      %v998 = vpop.permute.xlu0 %997
      %999 = vrot.lane.b32.xlu0 %v991, 96
      %v1000 = vpop.permute.xlu0 %999
      %v1001 = vsel %vm845, %v996, %v998
      %v1002 = vsel %vm845, %v998, %v1000
      %v1006 = vadd.f32 %v982, %v1001
      %v1007 = vadd.f32 %v983, %v1002
      %v1008 = vadd.f32 %v984, %v1000
      %1009 = vset.pattern.permute.xlu0 22
      %1010 = vperm.xlu0 %1009, %v231
      %v1011 = vpop.permute.xlu0 %1010
      %v1013 = vmul.f32 %v1011, %v795
      %v1014 = vmul.f32 %v1011, %v791
      %v1015 = vmul.f32 %v1011, %v796
      %1019 = vrot.lane.b32.xlu0 %v1013, 80
      %v1020 = vpop.permute.xlu0 %1019
      %1021 = vrot.lane.b32.xlu0 %v1014, 80
      %v1022 = vpop.permute.xlu0 %1021
      %1023 = vrot.lane.b32.xlu0 %v1015, 80
      %v1024 = vpop.permute.xlu0 %1023
      %v1025 = vsel %vm868, %v1020, %v1022
      %v1026 = vsel %vm868, %v1022, %v1024
      %v1030 = vadd.f32 %v1006, %v1025
      %v1031 = vadd.f32 %v1007, %v1026
      %v1032 = vadd.f32 %v1008, %v1024
      %1033 = vset.pattern.permute.xlu0 29
      %1034 = vperm.xlu0 %1033, %v231
      %v1035 = vpop.permute.xlu0 %1034
      %v1037 = vmul.f32 %v1035, %v795
      %v1038 = vmul.f32 %v1035, %v791
      %v1039 = vmul.f32 %v1035, %v796
      %1043 = vrot.lane.b32.xlu0 %v1037, 64
      %v1044 = vpop.permute.xlu0 %1043
      %1045 = vrot.lane.b32.xlu0 %v1038, 64
      %v1046 = vpop.permute.xlu0 %1045
      %1047 = vrot.lane.b32.xlu0 %v1039, 64
      %v1048 = vpop.permute.xlu0 %1047
      %v1049 = vsel %vm891, %v1044, %v1046
      %v1050 = vsel %vm891, %v1046, %v1048
      %v1054 = vadd.f32 %v1030, %v1049
      %v1055 = vadd.f32 %v1031, %v1050
      %v1056 = vadd.f32 %v1032, %v1048
      %1057 = vset.pattern.permute.xlu0 36
      %1058 = vperm.xlu0 %1057, %v231
      %v1059 = vpop.permute.xlu0 %1058
      %v1061 = vmul.f32 %v1059, %v795
      %v1062 = vmul.f32 %v1059, %v791
      %v1063 = vmul.f32 %v1059, %v796
      %1067 = vrot.lane.b32.xlu0 %v1061, 48
      %v1068 = vpop.permute.xlu0 %1067
      %1069 = vrot.lane.b32.xlu0 %v1062, 48
      %v1070 = vpop.permute.xlu0 %1069
      %1071 = vrot.lane.b32.xlu0 %v1063, 48
      %v1072 = vpop.permute.xlu0 %1071
      %v1073 = vsel %vm914, %v1068, %v1070
      %v1074 = vsel %vm914, %v1070, %v1072
      %v1078 = vadd.f32 %v1054, %v1073
      %v1079 = vadd.f32 %v1055, %v1074
      %v1080 = vadd.f32 %v1056, %v1072
      %1081 = vset.pattern.permute.xlu0 43
      %1082 = vperm.xlu0 %1081, %v231
      %v1083 = vpop.permute.xlu0 %1082
      %v1085 = vmul.f32 %v1083, %v795
      %v1086 = vmul.f32 %v1083, %v791
      %v1087 = vmul.f32 %v1083, %v796
      %1091 = vrot.lane.b32.xlu0 %v1085, 32
      %v1092 = vpop.permute.xlu0 %1091
      %1093 = vrot.lane.b32.xlu0 %v1086, 32
      %v1094 = vpop.permute.xlu0 %1093
      %1095 = vrot.lane.b32.xlu0 %v1087, 32
      %v1096 = vpop.permute.xlu0 %1095
      %v1097 = vsel %vm424, %v1092, %v1094
      %v1098 = vsel %vm424, %v1094, %v1096
      %v1102 = vadd.f32 %v1078, %v1097
      %v1103 = vadd.f32 %v1079, %v1098
      %v1104 = vadd.f32 %v1080, %v1096
      %v1105 = vsel %vm274, 1, 0
      %v1106 = vsel %vm275, 1, 0
      %vm1107 = vcmp.eq.s32.totalorder %v1105, 1
      %vm1108 = vcmp.eq.s32.totalorder %v1106, 1
      %1112 = vrot.lane.b32.xlu0 %v1102, 127
      %v1113 = vpop.permute.xlu0 %1112
      %1114 = vrot.lane.b32.xlu0 %v1103, 127
      %v1115 = vpop.permute.xlu0 %1114
      %1116 = vrot.lane.b32.xlu0 %v1104, 127
      %v1117 = vpop.permute.xlu0 %1116
      %vm1118 = vcmask 1039360
      %v1119 = vsel %vm1118, %v1113, %v1115
      %v1120 = vsel %vm1118, %v1115, %v1117
      %v1123 = vsel %vm1107, %v1119, 0.0
      %v1124 = vsel %vm1108, %v1120, 0.0
      %v1125 = vadd.f32 %v1123, 0.0
      %v1126 = vadd.f32 %v1124, 0.0
      %1127 = vset.pattern.permute.xlu0 2
      %1128 = vperm.xlu0 %1127, %v231
      %v1129 = vpop.permute.xlu0 %1128
      %v1131 = vmul.f32 %v1129, %v795
      %v1132 = vmul.f32 %v1129, %v791
      %v1133 = vmul.f32 %v1129, %v796
      %v1134 = vadd.f32 %v1131, 0.0
      %v1135 = vadd.f32 %v1132, 0.0
      %v1136 = vadd.f32 %v1133, 0.0
      %1137 = vset.pattern.permute.xlu0 9
      %1138 = vperm.xlu0 %1137, %v231
      %v1139 = vpop.permute.xlu0 %1138
      %v1141 = vmul.f32 %v1139, %v795
      %v1142 = vmul.f32 %v1139, %v791
      %v1143 = vmul.f32 %v1139, %v796
      %1147 = vrot.lane.b32.xlu0 %v1141, 112
      %v1148 = vpop.permute.xlu0 %1147
      %1149 = vrot.lane.b32.xlu0 %v1142, 112
      %v1150 = vpop.permute.xlu0 %1149
      %1151 = vrot.lane.b32.xlu0 %v1143, 112
      %v1152 = vpop.permute.xlu0 %1151
      %v1153 = vsel %vm822, %v1148, %v1150
      %v1154 = vsel %vm822, %v1150, %v1152
      %v1158 = vadd.f32 %v1134, %v1153
      %v1159 = vadd.f32 %v1135, %v1154
      %v1160 = vadd.f32 %v1136, %v1152
      %1161 = vset.pattern.permute.xlu0 16
      %1162 = vperm.xlu0 %1161, %v231
      %v1163 = vpop.permute.xlu0 %1162
      %v1165 = vmul.f32 %v1163, %v795
      %v1166 = vmul.f32 %v1163, %v791
      %v1167 = vmul.f32 %v1163, %v796
      %1171 = vrot.lane.b32.xlu0 %v1165, 96
      %v1172 = vpop.permute.xlu0 %1171
      %1173 = vrot.lane.b32.xlu0 %v1166, 96
      %v1174 = vpop.permute.xlu0 %1173
      %1175 = vrot.lane.b32.xlu0 %v1167, 96
      %v1176 = vpop.permute.xlu0 %1175
      %v1177 = vsel %vm845, %v1172, %v1174
      %v1178 = vsel %vm845, %v1174, %v1176
      %v1182 = vadd.f32 %v1158, %v1177
      %v1183 = vadd.f32 %v1159, %v1178
      %v1184 = vadd.f32 %v1160, %v1176
      %1185 = vset.pattern.permute.xlu0 23
      %1186 = vperm.xlu0 %1185, %v231
      %v1187 = vpop.permute.xlu0 %1186
      %v1189 = vmul.f32 %v1187, %v795
      %v1190 = vmul.f32 %v1187, %v791
      %v1191 = vmul.f32 %v1187, %v796
      %1195 = vrot.lane.b32.xlu0 %v1189, 80
      %v1196 = vpop.permute.xlu0 %1195
      %1197 = vrot.lane.b32.xlu0 %v1190, 80
      %v1198 = vpop.permute.xlu0 %1197
      %1199 = vrot.lane.b32.xlu0 %v1191, 80
      %v1200 = vpop.permute.xlu0 %1199
      %v1201 = vsel %vm868, %v1196, %v1198
      %v1202 = vsel %vm868, %v1198, %v1200
      %v1206 = vadd.f32 %v1182, %v1201
      %v1207 = vadd.f32 %v1183, %v1202
      %v1208 = vadd.f32 %v1184, %v1200
      %1209 = vset.pattern.permute.xlu0 30
      %1210 = vperm.xlu0 %1209, %v231
      %v1211 = vpop.permute.xlu0 %1210
      %v1213 = vmul.f32 %v1211, %v795
      %v1214 = vmul.f32 %v1211, %v791
      %v1215 = vmul.f32 %v1211, %v796
      %1219 = vrot.lane.b32.xlu0 %v1213, 64
      %v1220 = vpop.permute.xlu0 %1219
      %1221 = vrot.lane.b32.xlu0 %v1214, 64
      %v1222 = vpop.permute.xlu0 %1221
      %1223 = vrot.lane.b32.xlu0 %v1215, 64
      %v1224 = vpop.permute.xlu0 %1223
      %v1225 = vsel %vm891, %v1220, %v1222
      %v1226 = vsel %vm891, %v1222, %v1224
      %v1230 = vadd.f32 %v1206, %v1225
      %v1231 = vadd.f32 %v1207, %v1226
      %v1232 = vadd.f32 %v1208, %v1224
      %1233 = vset.pattern.permute.xlu0 37
      %1234 = vperm.xlu0 %1233, %v231
      %v1235 = vpop.permute.xlu0 %1234
      %v1237 = vmul.f32 %v1235, %v795
      %v1238 = vmul.f32 %v1235, %v791
      %v1239 = vmul.f32 %v1235, %v796
      %1243 = vrot.lane.b32.xlu0 %v1237, 48
      %v1244 = vpop.permute.xlu0 %1243
      %1245 = vrot.lane.b32.xlu0 %v1238, 48
      %v1246 = vpop.permute.xlu0 %1245
      %1247 = vrot.lane.b32.xlu0 %v1239, 48
      %v1248 = vpop.permute.xlu0 %1247
      %v1249 = vsel %vm914, %v1244, %v1246
      %v1250 = vsel %vm914, %v1246, %v1248
      %v1254 = vadd.f32 %v1230, %v1249
      %v1255 = vadd.f32 %v1231, %v1250
      %v1256 = vadd.f32 %v1232, %v1248
      %1257 = vset.pattern.permute.xlu0 44
      %1258 = vperm.xlu0 %1257, %v231
      %v1259 = vpop.permute.xlu0 %1258
      %v1261 = vmul.f32 %v1259, %v795
      %v1262 = vmul.f32 %v1259, %v791
      %v1263 = vmul.f32 %v1259, %v796
      %1267 = vrot.lane.b32.xlu0 %v1261, 32
      %v1268 = vpop.permute.xlu0 %1267
      %1269 = vrot.lane.b32.xlu0 %v1262, 32
      %v1270 = vpop.permute.xlu0 %1269
      %1271 = vrot.lane.b32.xlu0 %v1263, 32
      %v1272 = vpop.permute.xlu0 %1271
      %v1273 = vsel %vm424, %v1268, %v1270
      %v1274 = vsel %vm424, %v1270, %v1272
      %v1278 = vadd.f32 %v1254, %v1273
      %v1279 = vadd.f32 %v1255, %v1274
      %v1280 = vadd.f32 %v1256, %v1272
      %v1281 = vsel %vm282, 1, 0
      %v1282 = vsel %vm283, 1, 0
      %vm1283 = vcmp.eq.s32.totalorder %v1281, 1
      %vm1284 = vcmp.eq.s32.totalorder %v1282, 1
      %1288 = vrot.lane.b32.xlu0 %v1278, 126
      %v1289 = vpop.permute.xlu0 %1288
      %1290 = vrot.lane.b32.xlu0 %v1279, 126
      %v1291 = vpop.permute.xlu0 %1290
      %1292 = vrot.lane.b32.xlu0 %v1280, 126
      %v1293 = vpop.permute.xlu0 %1292
      %vm1294 = vcmask 1031168
      %v1295 = vsel %vm1294, %v1289, %v1291
      %v1296 = vsel %vm1294, %v1291, %v1293
      %v1299 = vsel %vm1283, %v1295, 0.0
      %v1300 = vsel %vm1284, %v1296, 0.0
      %v1301 = vadd.f32 %v949, %v1299
      %v1302 = vadd.f32 %v950, %v1300
      %1303 = vset.pattern.permute.xlu0 3
      %1304 = vperm.xlu0 %1303, %v231
      %v1305 = vpop.permute.xlu0 %1304
      %v1307 = vmul.f32 %v1305, %v795
      %v1308 = vmul.f32 %v1305, %v791
      %v1309 = vmul.f32 %v1305, %v796
      %v1310 = vadd.f32 %v1307, 0.0
      %v1311 = vadd.f32 %v1308, 0.0
      %v1312 = vadd.f32 %v1309, 0.0
      %1313 = vset.pattern.permute.xlu0 10
      %1314 = vperm.xlu0 %1313, %v231
      %v1315 = vpop.permute.xlu0 %1314
      %v1317 = vmul.f32 %v1315, %v795
      %v1318 = vmul.f32 %v1315, %v791
      %v1319 = vmul.f32 %v1315, %v796
      %1323 = vrot.lane.b32.xlu0 %v1317, 112
      %v1324 = vpop.permute.xlu0 %1323
      %1325 = vrot.lane.b32.xlu0 %v1318, 112
      %v1326 = vpop.permute.xlu0 %1325
      %1327 = vrot.lane.b32.xlu0 %v1319, 112
      %v1328 = vpop.permute.xlu0 %1327
      %v1329 = vsel %vm822, %v1324, %v1326
      %v1330 = vsel %vm822, %v1326, %v1328
      %v1334 = vadd.f32 %v1310, %v1329
      %v1335 = vadd.f32 %v1311, %v1330
      %v1336 = vadd.f32 %v1312, %v1328
      %1337 = vset.pattern.permute.xlu0 17
      %1338 = vperm.xlu0 %1337, %v231
      %v1339 = vpop.permute.xlu0 %1338
      %v1341 = vmul.f32 %v1339, %v795
      %v1342 = vmul.f32 %v1339, %v791
      %v1343 = vmul.f32 %v1339, %v796
      %1347 = vrot.lane.b32.xlu0 %v1341, 96
      %v1348 = vpop.permute.xlu0 %1347
      %1349 = vrot.lane.b32.xlu0 %v1342, 96
      %v1350 = vpop.permute.xlu0 %1349
      %1351 = vrot.lane.b32.xlu0 %v1343, 96
      %v1352 = vpop.permute.xlu0 %1351
      %v1353 = vsel %vm845, %v1348, %v1350
      %v1354 = vsel %vm845, %v1350, %v1352
      %v1358 = vadd.f32 %v1334, %v1353
      %v1359 = vadd.f32 %v1335, %v1354
      %v1360 = vadd.f32 %v1336, %v1352
      %1361 = vset.pattern.permute.xlu0 24
      %1362 = vperm.xlu0 %1361, %v231
      %v1363 = vpop.permute.xlu0 %1362
      %v1365 = vmul.f32 %v1363, %v795
      %v1366 = vmul.f32 %v1363, %v791
      %v1367 = vmul.f32 %v1363, %v796
      %1371 = vrot.lane.b32.xlu0 %v1365, 80
      %v1372 = vpop.permute.xlu0 %1371
      %1373 = vrot.lane.b32.xlu0 %v1366, 80
      %v1374 = vpop.permute.xlu0 %1373
      %1375 = vrot.lane.b32.xlu0 %v1367, 80
      %v1376 = vpop.permute.xlu0 %1375
      %v1377 = vsel %vm868, %v1372, %v1374
      %v1378 = vsel %vm868, %v1374, %v1376
      %v1382 = vadd.f32 %v1358, %v1377
      %v1383 = vadd.f32 %v1359, %v1378
      %v1384 = vadd.f32 %v1360, %v1376
      %1385 = vset.pattern.permute.xlu0 31
      %1386 = vperm.xlu0 %1385, %v231
      %v1387 = vpop.permute.xlu0 %1386
      %v1389 = vmul.f32 %v1387, %v795
      %v1390 = vmul.f32 %v1387, %v791
      %v1391 = vmul.f32 %v1387, %v796
      %1395 = vrot.lane.b32.xlu0 %v1389, 64
      %v1396 = vpop.permute.xlu0 %1395
      %1397 = vrot.lane.b32.xlu0 %v1390, 64
      %v1398 = vpop.permute.xlu0 %1397
      %1399 = vrot.lane.b32.xlu0 %v1391, 64
      %v1400 = vpop.permute.xlu0 %1399
      %v1401 = vsel %vm891, %v1396, %v1398
      %v1402 = vsel %vm891, %v1398, %v1400
      %v1406 = vadd.f32 %v1382, %v1401
      %v1407 = vadd.f32 %v1383, %v1402
      %v1408 = vadd.f32 %v1384, %v1400
      %1409 = vset.pattern.permute.xlu0 38
      %1410 = vperm.xlu0 %1409, %v231
      %v1411 = vpop.permute.xlu0 %1410
      %v1413 = vmul.f32 %v1411, %v795
      %v1414 = vmul.f32 %v1411, %v791
      %v1415 = vmul.f32 %v1411, %v796
      %1419 = vrot.lane.b32.xlu0 %v1413, 48
      %v1420 = vpop.permute.xlu0 %1419
      %1421 = vrot.lane.b32.xlu0 %v1414, 48
      %v1422 = vpop.permute.xlu0 %1421
      %1423 = vrot.lane.b32.xlu0 %v1415, 48
      %v1424 = vpop.permute.xlu0 %1423
      %v1425 = vsel %vm914, %v1420, %v1422
      %v1426 = vsel %vm914, %v1422, %v1424
      %v1430 = vadd.f32 %v1406, %v1425
      %v1431 = vadd.f32 %v1407, %v1426
      %v1432 = vadd.f32 %v1408, %v1424
      %1433 = vset.pattern.permute.xlu0 45
      %1434 = vperm.xlu0 %1433, %v231
      %v1435 = vpop.permute.xlu0 %1434
      %v1437 = vmul.f32 %v1435, %v795
      %v1438 = vmul.f32 %v1435, %v791
      %v1439 = vmul.f32 %v1435, %v796
      %1443 = vrot.lane.b32.xlu0 %v1437, 32
      %v1444 = vpop.permute.xlu0 %1443
      %1445 = vrot.lane.b32.xlu0 %v1438, 32
      %v1446 = vpop.permute.xlu0 %1445
      %1447 = vrot.lane.b32.xlu0 %v1439, 32
      %v1448 = vpop.permute.xlu0 %1447
      %v1449 = vsel %vm424, %v1444, %v1446
      %v1450 = vsel %vm424, %v1446, %v1448
      %v1454 = vadd.f32 %v1430, %v1449
      %v1455 = vadd.f32 %v1431, %v1450
      %v1456 = vadd.f32 %v1432, %v1448
      %v1457 = vsel %vm288, 1, 0
      %v1458 = vsel %vm289, 1, 0
      %vm1459 = vcmp.eq.s32.totalorder %v1457, 1
      %vm1460 = vcmp.eq.s32.totalorder %v1458, 1
      %1464 = vrot.lane.b32.xlu0 %v1454, 125
      %v1465 = vpop.permute.xlu0 %1464
      %1466 = vrot.lane.b32.xlu0 %v1455, 125
      %v1467 = vpop.permute.xlu0 %1466
      %1468 = vrot.lane.b32.xlu0 %v1456, 125
      %v1469 = vpop.permute.xlu0 %1468
      %vm1470 = vcmask 1022976
      %v1471 = vsel %vm1470, %v1465, %v1467
      %v1472 = vsel %vm1470, %v1467, %v1469
      %v1475 = vsel %vm1459, %v1471, 0.0
      %v1476 = vsel %vm1460, %v1472, 0.0
      %v1477 = vadd.f32 %v1125, %v1475
      %v1478 = vadd.f32 %v1126, %v1476
      %1479 = vset.pattern.permute.xlu0 4
      %1480 = vperm.xlu0 %1479, %v231
      %v1481 = vpop.permute.xlu0 %1480
      %v1483 = vmul.f32 %v1481, %v795
      %v1484 = vmul.f32 %v1481, %v791
      %v1485 = vmul.f32 %v1481, %v796
      %v1486 = vadd.f32 %v1483, 0.0
      %v1487 = vadd.f32 %v1484, 0.0
      %v1488 = vadd.f32 %v1485, 0.0
      %1489 = vset.pattern.permute.xlu0 11
      %1490 = vperm.xlu0 %1489, %v231
      %v1491 = vpop.permute.xlu0 %1490
      %v1493 = vmul.f32 %v1491, %v795
      %v1494 = vmul.f32 %v1491, %v791
      %v1495 = vmul.f32 %v1491, %v796
      %1499 = vrot.lane.b32.xlu0 %v1493, 112
      %v1500 = vpop.permute.xlu0 %1499
      %1501 = vrot.lane.b32.xlu0 %v1494, 112
      %v1502 = vpop.permute.xlu0 %1501
      %1503 = vrot.lane.b32.xlu0 %v1495, 112
      %v1504 = vpop.permute.xlu0 %1503
      %v1505 = vsel %vm822, %v1500, %v1502
      %v1506 = vsel %vm822, %v1502, %v1504
      %v1510 = vadd.f32 %v1486, %v1505
      %v1511 = vadd.f32 %v1487, %v1506
      %v1512 = vadd.f32 %v1488, %v1504
      %1513 = vset.pattern.permute.xlu0 18
      %1514 = vperm.xlu0 %1513, %v231
      %v1515 = vpop.permute.xlu0 %1514
      %v1517 = vmul.f32 %v1515, %v795
      %v1518 = vmul.f32 %v1515, %v791
      %v1519 = vmul.f32 %v1515, %v796
      %1523 = vrot.lane.b32.xlu0 %v1517, 96
      %v1524 = vpop.permute.xlu0 %1523
      %1525 = vrot.lane.b32.xlu0 %v1518, 96
      %v1526 = vpop.permute.xlu0 %1525
      %1527 = vrot.lane.b32.xlu0 %v1519, 96
      %v1528 = vpop.permute.xlu0 %1527
      %v1529 = vsel %vm845, %v1524, %v1526
      %v1530 = vsel %vm845, %v1526, %v1528
      %v1534 = vadd.f32 %v1510, %v1529
      %v1535 = vadd.f32 %v1511, %v1530
      %v1536 = vadd.f32 %v1512, %v1528
      %1537 = vset.pattern.permute.xlu0 25
      %1538 = vperm.xlu0 %1537, %v231
      %v1539 = vpop.permute.xlu0 %1538
      %v1541 = vmul.f32 %v1539, %v795
      %v1542 = vmul.f32 %v1539, %v791
      %v1543 = vmul.f32 %v1539, %v796
      %1547 = vrot.lane.b32.xlu0 %v1541, 80
      %v1548 = vpop.permute.xlu0 %1547
      %1549 = vrot.lane.b32.xlu0 %v1542, 80
      %v1550 = vpop.permute.xlu0 %1549
      %1551 = vrot.lane.b32.xlu0 %v1543, 80
      %v1552 = vpop.permute.xlu0 %1551
      %v1553 = vsel %vm868, %v1548, %v1550
      %v1554 = vsel %vm868, %v1550, %v1552
      %v1558 = vadd.f32 %v1534, %v1553
      %v1559 = vadd.f32 %v1535, %v1554
      %v1560 = vadd.f32 %v1536, %v1552
      %1561 = vset.pattern.permute.xlu0 32
      %1562 = vperm.xlu0 %1561, %v231
      %v1563 = vpop.permute.xlu0 %1562
      %v1565 = vmul.f32 %v1563, %v795
      %v1566 = vmul.f32 %v1563, %v791
      %v1567 = vmul.f32 %v1563, %v796
      %1571 = vrot.lane.b32.xlu0 %v1565, 64
      %v1572 = vpop.permute.xlu0 %1571
      %1573 = vrot.lane.b32.xlu0 %v1566, 64
      %v1574 = vpop.permute.xlu0 %1573
      %1575 = vrot.lane.b32.xlu0 %v1567, 64
      %v1576 = vpop.permute.xlu0 %1575
      %v1577 = vsel %vm891, %v1572, %v1574
      %v1578 = vsel %vm891, %v1574, %v1576
      %v1582 = vadd.f32 %v1558, %v1577
      %v1583 = vadd.f32 %v1559, %v1578
      %v1584 = vadd.f32 %v1560, %v1576
      %1585 = vset.pattern.permute.xlu0 39
      %1586 = vperm.xlu0 %1585, %v231
      %v1587 = vpop.permute.xlu0 %1586
      %v1589 = vmul.f32 %v1587, %v795
      %v1590 = vmul.f32 %v1587, %v791
      %v1591 = vmul.f32 %v1587, %v796
      %1595 = vrot.lane.b32.xlu0 %v1589, 48
      %v1596 = vpop.permute.xlu0 %1595
      %1597 = vrot.lane.b32.xlu0 %v1590, 48
      %v1598 = vpop.permute.xlu0 %1597
      %1599 = vrot.lane.b32.xlu0 %v1591, 48
      %v1600 = vpop.permute.xlu0 %1599
      %v1601 = vsel %vm914, %v1596, %v1598
      %v1602 = vsel %vm914, %v1598, %v1600
      %v1606 = vadd.f32 %v1582, %v1601
      %v1607 = vadd.f32 %v1583, %v1602
      %v1608 = vadd.f32 %v1584, %v1600
      %1609 = vset.pattern.permute.xlu0 46
      %1610 = vperm.xlu0 %1609, %v231
      %v1611 = vpop.permute.xlu0 %1610
      %v1613 = vmul.f32 %v1611, %v795
      %v1614 = vmul.f32 %v1611, %v791
      %v1615 = vmul.f32 %v1611, %v796
      %1619 = vrot.lane.b32.xlu0 %v1613, 32
      %v1620 = vpop.permute.xlu0 %1619
      %1621 = vrot.lane.b32.xlu0 %v1614, 32
      %v1622 = vpop.permute.xlu0 %1621
      %1623 = vrot.lane.b32.xlu0 %v1615, 32
      %v1624 = vpop.permute.xlu0 %1623
      %v1625 = vsel %vm424, %v1620, %v1622
      %v1626 = vsel %vm424, %v1622, %v1624
      %v1630 = vadd.f32 %v1606, %v1625
      %v1631 = vadd.f32 %v1607, %v1626
      %v1632 = vadd.f32 %v1608, %v1624
      %v1633 = vsel %vm296, 1, 0
      %v1634 = vsel %vm297, 1, 0
      %vm1635 = vcmp.eq.s32.totalorder %v1633, 1
      %vm1636 = vcmp.eq.s32.totalorder %v1634, 1
      %1640 = vrot.lane.b32.xlu0 %v1630, 124
      %v1641 = vpop.permute.xlu0 %1640
      %1642 = vrot.lane.b32.xlu0 %v1631, 124
      %v1643 = vpop.permute.xlu0 %1642
      %1644 = vrot.lane.b32.xlu0 %v1632, 124
      %v1645 = vpop.permute.xlu0 %1644
      %vm1646 = vcmask 1014784
      %v1647 = vsel %vm1646, %v1641, %v1643
      %v1648 = vsel %vm1646, %v1643, %v1645
      %v1651 = vsel %vm1635, %v1647, 0.0
      %v1652 = vsel %vm1636, %v1648, 0.0
      %v1653 = vadd.f32 %v1301, %v1651
      %v1654 = vadd.f32 %v1302, %v1652
      %1655 = vset.pattern.permute.xlu0 5
      %1656 = vperm.xlu0 %1655, %v231
      %v1657 = vpop.permute.xlu0 %1656
      %v1659 = vmul.f32 %v1657, %v795
      %v1660 = vmul.f32 %v1657, %v791
      %v1661 = vmul.f32 %v1657, %v796
      %v1662 = vadd.f32 %v1659, 0.0
      %v1663 = vadd.f32 %v1660, 0.0
      %v1664 = vadd.f32 %v1661, 0.0
      %1665 = vset.pattern.permute.xlu0 12
      %1666 = vperm.xlu0 %1665, %v231
      %v1667 = vpop.permute.xlu0 %1666
      %v1669 = vmul.f32 %v1667, %v795
      %v1670 = vmul.f32 %v1667, %v791
      %v1671 = vmul.f32 %v1667, %v796
      %1675 = vrot.lane.b32.xlu0 %v1669, 112
      %v1676 = vpop.permute.xlu0 %1675
      %1677 = vrot.lane.b32.xlu0 %v1670, 112
      %v1678 = vpop.permute.xlu0 %1677
      %1679 = vrot.lane.b32.xlu0 %v1671, 112
      %v1680 = vpop.permute.xlu0 %1679
      %v1681 = vsel %vm822, %v1676, %v1678
      %v1682 = vsel %vm822, %v1678, %v1680
      %v1686 = vadd.f32 %v1662, %v1681
      %v1687 = vadd.f32 %v1663, %v1682
      %v1688 = vadd.f32 %v1664, %v1680
      %1689 = vset.pattern.permute.xlu0 19
      %1690 = vperm.xlu0 %1689, %v231
      %v1691 = vpop.permute.xlu0 %1690
      %v1693 = vmul.f32 %v1691, %v795
      %v1694 = vmul.f32 %v1691, %v791
      %v1695 = vmul.f32 %v1691, %v796
      %1699 = vrot.lane.b32.xlu0 %v1693, 96
      %v1700 = vpop.permute.xlu0 %1699
      %1701 = vrot.lane.b32.xlu0 %v1694, 96
      %v1702 = vpop.permute.xlu0 %1701
      %1703 = vrot.lane.b32.xlu0 %v1695, 96
      %v1704 = vpop.permute.xlu0 %1703
      %v1705 = vsel %vm845, %v1700, %v1702
      %v1706 = vsel %vm845, %v1702, %v1704
      %v1710 = vadd.f32 %v1686, %v1705
      %v1711 = vadd.f32 %v1687, %v1706
      %v1712 = vadd.f32 %v1688, %v1704
      %1713 = vset.pattern.permute.xlu0 26
      %1714 = vperm.xlu0 %1713, %v231
      %v1715 = vpop.permute.xlu0 %1714
      %v1717 = vmul.f32 %v1715, %v795
      %v1718 = vmul.f32 %v1715, %v791
      %v1719 = vmul.f32 %v1715, %v796
      %1723 = vrot.lane.b32.xlu0 %v1717, 80
      %v1724 = vpop.permute.xlu0 %1723
      %1725 = vrot.lane.b32.xlu0 %v1718, 80
      %v1726 = vpop.permute.xlu0 %1725
      %1727 = vrot.lane.b32.xlu0 %v1719, 80
      %v1728 = vpop.permute.xlu0 %1727
      %v1729 = vsel %vm868, %v1724, %v1726
      %v1730 = vsel %vm868, %v1726, %v1728
      %v1734 = vadd.f32 %v1710, %v1729
      %v1735 = vadd.f32 %v1711, %v1730
      %v1736 = vadd.f32 %v1712, %v1728
      %1737 = vset.pattern.permute.xlu0 33
      %1738 = vperm.xlu0 %1737, %v231
      %v1739 = vpop.permute.xlu0 %1738
      %v1741 = vmul.f32 %v1739, %v795
      %v1742 = vmul.f32 %v1739, %v791
      %v1743 = vmul.f32 %v1739, %v796
      %1747 = vrot.lane.b32.xlu0 %v1741, 64
      %v1748 = vpop.permute.xlu0 %1747
      %1749 = vrot.lane.b32.xlu0 %v1742, 64
      %v1750 = vpop.permute.xlu0 %1749
      %1751 = vrot.lane.b32.xlu0 %v1743, 64
      %v1752 = vpop.permute.xlu0 %1751
      %v1753 = vsel %vm891, %v1748, %v1750
      %v1754 = vsel %vm891, %v1750, %v1752
      %v1758 = vadd.f32 %v1734, %v1753
      %v1759 = vadd.f32 %v1735, %v1754
      %v1760 = vadd.f32 %v1736, %v1752
      %1761 = vset.pattern.permute.xlu0 40
      %1762 = vperm.xlu0 %1761, %v231
      %v1763 = vpop.permute.xlu0 %1762
      %v1765 = vmul.f32 %v1763, %v795
      %v1766 = vmul.f32 %v1763, %v791
      %v1767 = vmul.f32 %v1763, %v796
      %1771 = vrot.lane.b32.xlu0 %v1765, 48
      %v1772 = vpop.permute.xlu0 %1771
      %1773 = vrot.lane.b32.xlu0 %v1766, 48
      %v1774 = vpop.permute.xlu0 %1773
      %1775 = vrot.lane.b32.xlu0 %v1767, 48
      %v1776 = vpop.permute.xlu0 %1775
      %v1777 = vsel %vm914, %v1772, %v1774
      %v1778 = vsel %vm914, %v1774, %v1776
      %v1782 = vadd.f32 %v1758, %v1777
      %v1783 = vadd.f32 %v1759, %v1778
      %v1784 = vadd.f32 %v1760, %v1776
      %1785 = vset.pattern.permute.xlu0 47
      %1786 = vperm.xlu0 %1785, %v231
      %v1787 = vpop.permute.xlu0 %1786
      %v1789 = vmul.f32 %v1787, %v795
      %v1790 = vmul.f32 %v1787, %v791
      %v1791 = vmul.f32 %v1787, %v796
      %1795 = vrot.lane.b32.xlu0 %v1789, 32
      %v1796 = vpop.permute.xlu0 %1795
      %1797 = vrot.lane.b32.xlu0 %v1790, 32
      %v1798 = vpop.permute.xlu0 %1797
      %1799 = vrot.lane.b32.xlu0 %v1791, 32
      %v1800 = vpop.permute.xlu0 %1799
      %v1801 = vsel %vm424, %v1796, %v1798
      %v1802 = vsel %vm424, %v1798, %v1800
      %v1806 = vadd.f32 %v1782, %v1801
      %v1807 = vadd.f32 %v1783, %v1802
      %v1808 = vadd.f32 %v1784, %v1800
      %v1809 = vsel %vm304, 1, 0
      %v1810 = vsel %vm305, 1, 0
      %vm1811 = vcmp.eq.s32.totalorder %v1809, 1
      %vm1812 = vcmp.eq.s32.totalorder %v1810, 1
      %1816 = vrot.lane.b32.xlu0 %v1806, 123
      %v1817 = vpop.permute.xlu0 %1816
      %1818 = vrot.lane.b32.xlu0 %v1807, 123
      %v1819 = vpop.permute.xlu0 %1818
      %1820 = vrot.lane.b32.xlu0 %v1808, 123
      %v1821 = vpop.permute.xlu0 %1820
      %vm1822 = vcmask 1006592
      %v1823 = vsel %vm1822, %v1817, %v1819
      %v1824 = vsel %vm1822, %v1819, %v1821
      %v1827 = vsel %vm1811, %v1823, 0.0
      %v1828 = vsel %vm1812, %v1824, 0.0
      %v1829 = vadd.f32 %v1477, %v1827
      %v1830 = vadd.f32 %v1478, %v1828
      %1831 = vset.pattern.permute.xlu0 6
      %1832 = vperm.xlu0 %1831, %v231
      %v1833 = vpop.permute.xlu0 %1832
      %v1835 = vmul.f32 %v1833, %v795
      %v1836 = vmul.f32 %v1833, %v791
      %v1837 = vmul.f32 %v1833, %v796
      %v1838 = vadd.f32 %v1835, 0.0
      %v1839 = vadd.f32 %v1836, 0.0
      %v1840 = vadd.f32 %v1837, 0.0
      %1841 = vset.pattern.permute.xlu0 13
      %1842 = vperm.xlu0 %1841, %v231
      %v1843 = vpop.permute.xlu0 %1842
      %v1845 = vmul.f32 %v1843, %v795
      %v1846 = vmul.f32 %v1843, %v791
      %v1847 = vmul.f32 %v1843, %v796
      %1851 = vrot.lane.b32.xlu0 %v1845, 112
      %v1852 = vpop.permute.xlu0 %1851
      %1853 = vrot.lane.b32.xlu0 %v1846, 112
      %v1854 = vpop.permute.xlu0 %1853
      %1855 = vrot.lane.b32.xlu0 %v1847, 112
      %v1856 = vpop.permute.xlu0 %1855
      %v1857 = vsel %vm822, %v1852, %v1854
      %v1858 = vsel %vm822, %v1854, %v1856
      %v1862 = vadd.f32 %v1838, %v1857
      %v1863 = vadd.f32 %v1839, %v1858
      %v1864 = vadd.f32 %v1840, %v1856
      %1865 = vset.pattern.permute.xlu0 20
      %1866 = vperm.xlu0 %1865, %v231
      %v1867 = vpop.permute.xlu0 %1866
      %v1869 = vmul.f32 %v1867, %v795
      %v1870 = vmul.f32 %v1867, %v791
      %v1871 = vmul.f32 %v1867, %v796
      %1875 = vrot.lane.b32.xlu0 %v1869, 96
      %v1876 = vpop.permute.xlu0 %1875
      %1877 = vrot.lane.b32.xlu0 %v1870, 96
      %v1878 = vpop.permute.xlu0 %1877
      %1879 = vrot.lane.b32.xlu0 %v1871, 96
      %v1880 = vpop.permute.xlu0 %1879
      %v1881 = vsel %vm845, %v1876, %v1878
      %v1882 = vsel %vm845, %v1878, %v1880
      %v1886 = vadd.f32 %v1862, %v1881
      %v1887 = vadd.f32 %v1863, %v1882
      %v1888 = vadd.f32 %v1864, %v1880
      %1889 = vset.pattern.permute.xlu0 27
      %1890 = vperm.xlu0 %1889, %v231
      %v1891 = vpop.permute.xlu0 %1890
      %v1893 = vmul.f32 %v1891, %v795
      %v1894 = vmul.f32 %v1891, %v791
      %v1895 = vmul.f32 %v1891, %v796
      %1899 = vrot.lane.b32.xlu0 %v1893, 80
      %v1900 = vpop.permute.xlu0 %1899
      %1901 = vrot.lane.b32.xlu0 %v1894, 80
      %v1902 = vpop.permute.xlu0 %1901
      %1903 = vrot.lane.b32.xlu0 %v1895, 80
      %v1904 = vpop.permute.xlu0 %1903
      %v1905 = vsel %vm868, %v1900, %v1902
      %v1906 = vsel %vm868, %v1902, %v1904
      %v1910 = vadd.f32 %v1886, %v1905
      %v1911 = vadd.f32 %v1887, %v1906
      %v1912 = vadd.f32 %v1888, %v1904
      %1913 = vset.pattern.permute.xlu0 34
      %1914 = vperm.xlu0 %1913, %v231
      %v1915 = vpop.permute.xlu0 %1914
      %v1917 = vmul.f32 %v1915, %v795
      %v1918 = vmul.f32 %v1915, %v791
      %v1919 = vmul.f32 %v1915, %v796
      %1923 = vrot.lane.b32.xlu0 %v1917, 64
      %v1924 = vpop.permute.xlu0 %1923
      %1925 = vrot.lane.b32.xlu0 %v1918, 64
      %v1926 = vpop.permute.xlu0 %1925
      %1927 = vrot.lane.b32.xlu0 %v1919, 64
      %v1928 = vpop.permute.xlu0 %1927
      %v1929 = vsel %vm891, %v1924, %v1926
      %v1930 = vsel %vm891, %v1926, %v1928
      %v1934 = vadd.f32 %v1910, %v1929
      %v1935 = vadd.f32 %v1911, %v1930
      %v1936 = vadd.f32 %v1912, %v1928
      %1937 = vset.pattern.permute.xlu0 41
      %1938 = vperm.xlu0 %1937, %v231
      %v1939 = vpop.permute.xlu0 %1938
      %v1941 = vmul.f32 %v1939, %v795
      %v1942 = vmul.f32 %v1939, %v791
      %v1943 = vmul.f32 %v1939, %v796
      %1947 = vrot.lane.b32.xlu0 %v1941, 48
      %v1948 = vpop.permute.xlu0 %1947
      %1949 = vrot.lane.b32.xlu0 %v1942, 48
      %v1950 = vpop.permute.xlu0 %1949
      %1951 = vrot.lane.b32.xlu0 %v1943, 48
      %v1952 = vpop.permute.xlu0 %1951
      %v1953 = vsel %vm914, %v1948, %v1950
      %v1954 = vsel %vm914, %v1950, %v1952
      %v1958 = vadd.f32 %v1934, %v1953
      %v1959 = vadd.f32 %v1935, %v1954
      %v1960 = vadd.f32 %v1936, %v1952
      %1961 = vset.pattern.permute.xlu0 48
      %1962 = vperm.xlu0 %1961, %v231
      %v1963 = vpop.permute.xlu0 %1962
      %v1965 = vmul.f32 %v1963, %v795
      %v1966 = vmul.f32 %v1963, %v791
      %v1967 = vmul.f32 %v1963, %v796
      %1971 = vrot.lane.b32.xlu0 %v1965, 32
      %v1972 = vpop.permute.xlu0 %1971
      %1973 = vrot.lane.b32.xlu0 %v1966, 32
      %v1974 = vpop.permute.xlu0 %1973
      %1975 = vrot.lane.b32.xlu0 %v1967, 32
      %v1976 = vpop.permute.xlu0 %1975
      %v1977 = vsel %vm424, %v1972, %v1974
      %v1978 = vsel %vm424, %v1974, %v1976
      %v1982 = vadd.f32 %v1958, %v1977
      %v1983 = vadd.f32 %v1959, %v1978
      %v1984 = vadd.f32 %v1960, %v1976
      %v1985 = vsel %vm312, 1, 0
      %v1986 = vsel %vm313, 1, 0
      %vm1987 = vcmp.eq.s32.totalorder %v1985, 1
      %vm1988 = vcmp.eq.s32.totalorder %v1986, 1
      %1992 = vrot.lane.b32.xlu0 %v1982, 122
      %v1993 = vpop.permute.xlu0 %1992
      %1994 = vrot.lane.b32.xlu0 %v1983, 122
      %v1995 = vpop.permute.xlu0 %1994
      %1996 = vrot.lane.b32.xlu0 %v1984, 122
      %v1997 = vpop.permute.xlu0 %1996
      %vm1998 = vcmask 998400
      %v1999 = vsel %vm1998, %v1993, %v1995
      %v2000 = vsel %vm1998, %v1995, %v1997
      %v2003 = vsel %vm1987, %v1999, 0.0
      %v2004 = vsel %vm1988, %v2000, 0.0
      %v2005 = vadd.f32 %v1653, %v2003
      %v2006 = vadd.f32 %v1654, %v2004
      %v2007 = vadd.f32 %v2005, %v1829
      %v2008 = vadd.f32 %v2006, %v1830
      %v2009 = vsel %vm512, %v2007, 0.0
      %v2010 = vrot.slane %v2009, 4
      %v2011 = vadd.f32 %v2009, %v2010
      %v2012 = vrot.slane %v2011, 2
      %v2013 = vadd.f32 %v2011, %v2012
      %v2014 = vrot.slane %v2013, 1
      %v2015 = vadd.f32 %v2013, %v2014
      %v2016 = vsel %vm512, %v2008, 0.0
      %v2017 = vrot.slane %v2016, 4
      %v2018 = vadd.f32 %v2016, %v2017
      %v2019 = vrot.slane %v2018, 2
      %v2020 = vadd.f32 %v2018, %v2019
      %v2021 = vrot.slane %v2020, 1
      %v2022 = vadd.f32 %v2020, %v2021
      %v2023 = vstv %s232
      %v2024 = vadd.f32 %v2015, %v2023
      %v2025 = vadd.f32 %v2022, %v2023
      %v2026 = vxor.u32 %v2024, 2147483648
      %v2027 = vxor.u32 %v2025, 2147483648
      %v2028 = vmul.f32 %v2026, 1.442695
      %v2029 = vpow.pop %v2028
      %v2030 = vmul.f32 %v2027, 1.442695
      %v2031 = vpow.pop %v2030
      %v2032 = vadd.f32 %v2029, 1.0
      %v2033 = vadd.f32 %v2031, 1.0
      %v2034 = vrcp.pop %v2032
      %v2035 = vmul.f32 1.0, %v2034
      %v2036 = vrcp.pop %v2033
      %v2037 = vmul.f32 1.0, %v2036
      %v2038 = vmul.f32 %v681, %v2035
      %v2039 = vmul.f32 %v682, %v2037
      %v2040 = vmul.f32 %v683, %v2035
      %v2041 = vmul.f32 %v684, %v2037
      %v2042 = vmul.f32 %v685, %v2035
      %v2043 = vmul.f32 %v686, %v2037
      %v2044 = vmul.f32 %v687, %v2035
      %v2045 = vmul.f32 %v688, %v2037
      %2046 = vst [vmem:[%s225] sm:$0xff] %v2038
      %2047 = vst [vmem:[%s225 + $0x8] sm:$0xff] %v2039
      %2048 = vst [vmem:[%s225 + $0x10] sm:$0xff] %v2040
      %2049 = vst [vmem:[%s225 + $0x18] sm:$0xff] %v2041
      %2050 = vst [vmem:[%s225 + $0x20] sm:$0xff] %v2042
      %2051 = vst [vmem:[%s225 + $0x28] sm:$0xff] %v2043
      %2052 = vst [vmem:[%s225 + $0x30] sm:$0xff] %v2044
      %2053 = vst [vmem:[%s225 + $0x38] sm:$0xff] %v2045
      %p2054 = scmp.lt.s32.totalorder %s17, 1
      %s2055 = scalar_select %p2054, %s17, 1
      %s2056 = smul.addr %s2055, 8
      %s2057 = smul.addr %s2056, 8
      %s2058 = scalar_lea.vmem %s5, %s2057
      // Predicated region
      $region41: #{cbam_forward.1} parent=39 // pred_check
        %p2059 = pneg %p145
      $region42: #{cbam_forward.1} parent=39 // pred_check_branch
        %2061 = sbr.rel (%p2059) target = $region44
      $region43: #{cbam_forward.1} parent=39 // pred_region
        _
      $region44: #{cbam_forward.1} parent=39 // pred_fallthru
        _
    $region40: #{cbam_forward.1} parent=5 // pred_fallthru
      _
    %p2062 = scmp.le.s32.totalorder 2, %s12
    // Predicated region
    $region45: #{cbam_forward.1} parent=5 // pred_check
      %p2063 = pneg %p2062
    $region46: #{cbam_forward.1} parent=5 // pred_check_branch
      %2065 = sbr.rel (%p2063) target = $region48
    $region47: #{cbam_forward.1} parent=5 // pred_region
      %s2066 = ssub.s32 %s12, 2
      // Predicated region
      $region49: #{cbam_forward.1} parent=47 // pred_check
        %p2067 = pneg %p151
      $region50: #{cbam_forward.1} parent=47 // pred_check_branch
        %2069 = sbr.rel (%p2067) target = $region52
      $region51: #{cbam_forward.1} parent=47 // pred_region
        %p2070 = scmp.lt.s32.totalorder %s18, 1
        %s2071 = scalar_select %p2070, %s18, 1
        %s2072 = smul.addr %s2071, 8
        %s2073 = smul.addr %s2072, 8
        %s2074 = scalar_lea.vmem %s5, %s2073
      $region52: #{cbam_forward.1} parent=47 // pred_fallthru
        _
    $region48: #{cbam_forward.1} parent=5 // pred_fallthru
      _
  $region6: #{cbam_forward.1} parent=0 // loop_footer
    %s16 = sadd.s32 1, %s12
  $region7: #{cbam_forward.1} parent=0 // loop_footer_branch
    %11 = sbr.rel target = $region3
  $region8: #{cbam_forward.1} parent=0 // loop_exit
    _

</llo_original>
